<compile_context>
chip_gen: v7x
topology: tpu7x:2x2x1
jax: 0.10.0
libtpu: 0.0.40
codegen_flags: <defaults>
</compile_context>

<pallas_src>
import functools
import math

import numpy as np

import jax
import jax.numpy as jnp
from jax import lax
from jax.experimental import pallas as pl
from jax.experimental.pallas import tpu as pltpu


def _fused_maskconv_kernel(x_ref,     # VMEM (D, L) f32: input replicated across C1 lane segments
                           w1_ref,    # VMEM (KH1*KW1, D, L) f32: per-tap weight planes (masks folded)
                           b1_ref,    # VMEM (1, L) f32: BN-folded bias, per lane
                           w2_ref,    # VMEM (C1*KH2*KW2, D, L) f32: per-(segment,tap) weight planes
                           b2_ref,    # VMEM (1, L) f32
                           len_ref,   # VMEM (1, L) i32: valid time length per lane
                           o_ref,     # VMEM (D, L) f32
                           *, shifts1, shifts2, lane_w, d, t):
    # Lane layout of every slab is (channel, batch, time), time fastest.
    # Time-validity mask: lane is valid iff (lane % T) < lengths[batch(lane)].
    t_idx = lax.broadcasted_iota(jnp.int32, (1, lane_w), 1) % t
    valid = (t_idx < len_ref[...]).astype(jnp.float32)          # (1, L), 1.0 / 0.0

    def conv(inp, w_ref, shifts):
        # One tap = shift the whole slab with XLU rolls, then MAC against a
        # weight plane that already has the zero-padding / segment-boundary /
        # per-output-channel weights folded in (so no per-tap masks/selects).
        acc = jnp.zeros((d, lane_w), jnp.float32)
        for k, (lane_sh, sub_sh) in enumerate(shifts):
            win = inp
            ls = (-lane_sh) % lane_w
            if ls:
                win = pltpu.roll(win, shift=ls, axis=1)   # time (+ channel segment) shift
            ss = (-sub_sh) % d
            if ss:
                win = pltpu.roll(win, shift=ss, axis=0)   # freq shift
            acc = acc + w_ref[k] * win
        return acc

    # block 1: Conv2d(1->C1, 5x5, pad 2) [BN folded] -> Hardtanh(0,20) -> time mask
    y = jnp.clip(conv(x_ref[...], w1_ref, shifts1) + b1_ref[...], 0.0, 20.0) * valid
    # block 2: Conv2d(C1->C2, 3x3, pad 1) [BN folded] -> Hardtanh(0,20) -> time mask
    z = jnp.clip(conv(y, w2_ref, shifts2) + b2_ref[...], 0.0, 20.0) * valid
    o_ref[...] = z.astype(o_ref.dtype)


def _expand_weight_planes(w_folded, B, T, D, ph, pw, *, with_segment_shift):
    """Build per-tap (D, C_out*B*T) weight planes + static roll amounts.

    acc += plane_k * roll(slab, lanes=-shifts[k][0], sublanes=-shifts[k][1])
    implements one zero-padded conv tap; out-of-range (zero-pad) positions and
    lane-segment crossings are folded into the planes as exact zeros.
    """
    C_out, C_in, KH, KW = w_folded.shape
    seg = B * T
    o_idx = jnp.repeat(jnp.arange(C_out), seg)          # output channel per lane
    t_idx = jnp.tile(jnp.arange(T), C_out * B)          # time index per lane
    d_idx = jnp.arange(D)
    planes, shifts = [], []
    seg_shifts = range(C_in) if with_segment_shift else [0]
    for s in seg_shifts:
        if with_segment_shift:
            c_idx = (o_idx + s) % C_in                  # input channel brought in by lane roll s*seg
        else:
            c_idx = jnp.zeros_like(o_idx)               # single input channel (replicated slab)
        for di in range(-ph, KH - ph):
            d_ok = ((d_idx + di >= 0) & (d_idx + di < D)).astype(jnp.float32)      # (D,)
            for dj in range(-pw, KW - pw):
                t_ok = ((t_idx + dj >= 0) & (t_idx + dj < T)).astype(jnp.float32)  # (L,)
                w_lane = w_folded[o_idx, c_idx, di + ph, dj + pw]                  # (L,)
                planes.append(d_ok[:, None] * (w_lane * t_ok)[None, :])
                shifts.append((s * seg + dj, di))
    return jnp.stack(planes), tuple(shifts)


def mask_conv_forward(x, lengths, blocks):
    """MaskConv.forward for a 2-block conv stack, fused into one pallas_call."""
    assert len(blocks) == 2, "fused kernel expects exactly two conv blocks"
    p1, p2 = blocks
    B, C_in, D, T = x.shape
    C1, c_in_w1, KH1, KW1 = p1["w"].shape
    C2, c_in_w2, KH2, KW2 = p2["w"].shape
    # TODO(synk): multi-channel input (C_in>1) needs segment-shift handling like block 2.
    assert c_in_w1 == C_in == 1
    assert c_in_w2 == C1 and C1 == C2, "segment-roll trick needs equal slab widths"
    ph1, pw1 = p1["padding"]
    ph2, pw2 = p2["padding"]
    # 'same' convs (stride 1) so the time axis stays aligned with `lengths`
    assert D + 2 * ph1 - KH1 + 1 == D and T + 2 * pw1 - KW1 + 1 == T
    assert D + 2 * ph2 - KH2 + 1 == D and T + 2 * pw2 - KW2 + 1 == T
    lane_w = C1 * B * T
    assert lane_w % 128 == 0 and D % 8 == 0, "lane-dense layout requires 128-lane slabs"

    # Fold BatchNorm (inference affine) + conv bias into the conv weights.
    w1f = p1["w"] * p1["bn_scale"][:, None, None, None]
    b1f = p1["b"] * p1["bn_scale"] + p1["bn_bias"]
    w2f = p2["w"] * p2["bn_scale"][:, None, None, None]
    b2f = p2["b"] * p2["bn_scale"] + p2["bn_bias"]

    # Lane-dense packing (layout plumbing): (D, C*B*T), lane order (channel, batch, time).
    # Block-1's single input channel is replicated across the C1 output segments.
    x_slab = jnp.tile(x[:, 0].transpose(1, 0, 2).reshape(D, B * T), (1, C1))     # (D, L)
    w1_planes, shifts1 = _expand_weight_planes(w1f, B, T, D, ph1, pw1, with_segment_shift=False)
    w2_planes, shifts2 = _expand_weight_planes(w2f, B, T, D, ph2, pw2, with_segment_shift=True)
    b1_vec = jnp.repeat(b1f, B * T)[None, :]                                      # (1, L)
    b2_vec = jnp.repeat(b2f, B * T)[None, :]                                      # (1, L)
    len_vec = jnp.tile(jnp.repeat(lengths.astype(jnp.int32), T), C1)[None, :]     # (1, L)

    kernel = functools.partial(_fused_maskconv_kernel,
                               shifts1=shifts1, shifts2=shifts2,
                               lane_w=lane_w, d=D, t=T)
    vmem = pl.BlockSpec(memory_space=pltpu.MemorySpace.VMEM)
    out_slab = pl.pallas_call(
        kernel,
        out_shape=jax.ShapeDtypeStruct((D, lane_w), x.dtype),
        in_specs=[vmem] * 6,
        out_specs=vmem,
    )(x_slab, w1_planes, b1_vec, w2_planes, b2_vec, len_vec)

    # Undo the lane packing: (D, C2*B*T) -> (B, C2, D, T).
    out = out_slab.reshape(D, C2, B, T).transpose(2, 1, 0, 3)
    return out, lengths


# ----------------------------- reference (plain JAX) -----------------------------
def _apply_mask_ref(y, lengths):
    T = y.shape[-1]
    t = jnp.arange(T, dtype=jnp.int32)
    mask = t[None, :] >= lengths[:, None]          # (B, T)
    return jnp.where(mask[:, None, None, :], 0.0, y)


def mask_conv_reference(x, lengths, blocks):
    for p in blocks:
        ph, pw = p["padding"]
        y = lax.conv_general_dilated(
            x, p["w"], window_strides=(1, 1),
            padding=[(ph, ph), (pw, pw)],
            dimension_numbers=("NCHW", "OIHW", "NCHW"))
        y = y + p["b"][None, :, None, None]
        y = _apply_mask_ref(y, lengths)                               # after Conv2d
        y = y * p["bn_scale"][None, :, None, None] + p["bn_bias"][None, :, None, None]
        y = _apply_mask_ref(y, lengths)                               # after BatchNorm2d
        y = jnp.clip(y, 0.0, 20.0)
        y = _apply_mask_ref(y, lengths)                               # after Hardtanh
        x = y
    return x, lengths


# ----------------------------- parameter construction -----------------------------
def make_block_params(key, c_in, c_out, kh, kw, padding):
    k1, k2, k3, k4, k5, k6 = jax.random.split(key, 6)
    fan_in = c_in * kh * kw
    w = jax.random.normal(k1, (c_out, c_in, kh, kw), jnp.float32) / math.sqrt(fan_in)
    b = 0.1 * jax.random.normal(k2, (c_out,), jnp.float32)
    gamma = 1.0 + 0.1 * jax.random.normal(k3, (c_out,), jnp.float32)
    beta = 0.1 * jax.random.normal(k4, (c_out,), jnp.float32)
    running_mean = 0.1 * jax.random.normal(k5, (c_out,), jnp.float32)
    running_var = jnp.abs(jax.random.normal(k6, (c_out,), jnp.float32)) + 0.5
    eps = 1e-5
    scale = gamma / jnp.sqrt(running_var + eps)
    bias = beta - running_mean * scale
    return dict(w=w, b=b, bn_scale=scale, bn_bias=bias, padding=padding)


if __name__ == "__main__":
    key = jax.random.PRNGKey(0)
    kx, kb1, kb2 = jax.random.split(key, 3)

    # input: (B, C, D, T) = (2, 1, 16, 16), per-batch valid time lengths
    B, C, D, T = 2, 1, 16, 16
    x = jax.random.normal(kx, (B, C, D, T), jnp.float32)
    lengths = jnp.array([16, 11], dtype=jnp.int32)

    blocks = [
        make_block_params(kb1, c_in=1, c_out=4, kh=5, kw=5, padding=(2, 2)),
        make_block_params(kb2, c_in=4, c_out=4, kh=3, kw=3, padding=(1, 1)),
    ]

    out, out_lengths = mask_conv_forward(x, lengths, blocks)
    out = jax.block_until_ready(out)

    ref, _ = mask_conv_reference(x, lengths, blocks)
    ref = jax.block_until_ready(ref)

    assert out.shape == (B, 4, D, T), out.shape
    np.testing.assert_allclose(np.asarray(out), np.asarray(ref),
                               rtol=1e-4, atol=1e-4)
    # masked time steps must be exactly zero
    assert float(jnp.abs(out[1, :, :, 11:]).max()) == 0.0
    assert bool(jnp.array_equal(out_lengths, lengths))

    print("KERNEL_OK")
</pallas_src>

<mosaic_0001>
module attributes {stable_mosaic.version = 11 : i64} {
  func.func @_fused_maskconv_kernel(%arg0: memref<16x128xf32, #tpu.memory_space<vmem>>, %arg1: memref<25x16x128xf32, #tpu.memory_space<vmem>>, %arg2: memref<1x128xf32, #tpu.memory_space<vmem>>, %arg3: memref<36x16x128xf32, #tpu.memory_space<vmem>>, %arg4: memref<1x128xf32, #tpu.memory_space<vmem>>, %arg5: memref<1x128xi32, #tpu.memory_space<vmem>>, %arg6: memref<16x128xf32, #tpu.memory_space<vmem>>) attributes {dimension_semantics = [], scalar_prefetch = 0 : i64, scratch_operands = 0 : i64, tpu.core_type = #tpu.core_type<tc>} {
    %0 = tpu.iota {dimensions = array<i32: 1>} : vector<1x128xi32>
    %c16_i32 = arith.constant 16 : i32
    %c0_i32 = arith.constant 0 : i32
    %1 = arith.cmpi eq, %c16_i32, %c0_i32 : i32
    %c1_i32 = arith.constant 1 : i32
    %2 = arith.select %1, %c1_i32, %c16_i32 : i32
    %3 = vector.broadcast %2 : i32 to vector<1x128xi32>
    %4 = arith.remsi %0, %3 : vector<1x128xi32>
    %c0_i32_0 = arith.constant 0 : i32
    %5 = vector.broadcast %c0_i32_0 : i32 to vector<1x128xi32>
    %6 = arith.cmpi ne, %4, %5 : vector<1x128xi32>
    %c0_i32_1 = arith.constant 0 : i32
    %7 = vector.broadcast %c0_i32_1 : i32 to vector<1x128xi32>
    %8 = arith.cmpi slt, %4, %7 : vector<1x128xi32>
    %c0_i32_2 = arith.constant 0 : i32
    %9 = arith.cmpi slt, %2, %c0_i32_2 : i32
    %10 = vector.broadcast %9 : i1 to vector<1x128xi1>
    %11 = vector.broadcast %10 : vector<1x128xi1> to vector<1x128xi1>
    %12 = arith.xori %8, %11 : vector<1x128xi1>
    %13 = arith.andi %12, %6 : vector<1x128xi1>
    %14 = vector.broadcast %2 : i32 to vector<1x128xi32>
    %15 = arith.addi %4, %14 : vector<1x128xi32>
    %16 = arith.select %13, %15, %4 : vector<1x128xi1>, vector<1x128xi32>
    %c0 = arith.constant 0 : index
    %c0_3 = arith.constant 0 : index
    %17 = vector.load %arg5[%c0, %c0_3] : memref<1x128xi32, #tpu.memory_space<vmem>>, vector<1x128xi32>
    %18 = arith.cmpi slt, %16, %17 : vector<1x128xi32>
    %19 = arith.extui %18 : vector<1x128xi1> to vector<1x128xi32>
    %20 = arith.sitofp %19 : vector<1x128xi32> to vector<1x128xf32>
    %c0_4 = arith.constant 0 : index
    %c0_5 = arith.constant 0 : index
    %21 = vector.load %arg0[%c0_4, %c0_5] : memref<16x128xf32, #tpu.memory_space<vmem>>, vector<16x128xf32>
    %cst = arith.constant 0.000000e+00 : f32
    %22 = vector.broadcast %cst : f32 to vector<16x128xf32>
    %c2_i32 = arith.constant 2 : i32
    %23 = tpu.dynamic_rotate %21 by %c2_i32 dim 1 : vector<16x128xf32>, i32 -> vector<16x128xf32>
    %c2_i32_6 = arith.constant 2 : i32
    %24 = tpu.dynamic_rotate %23 by %c2_i32_6 dim 0 : vector<16x128xf32>, i32 -> vector<16x128xf32>
    %c0_7 = arith.constant 0 : index
    %c0_8 = arith.constant 0 : index
    %c0_9 = arith.constant 0 : index
    %25 = vector.load %arg1[%c0_7, %c0_8, %c0_9] : memref<25x16x128xf32, #tpu.memory_space<vmem>>, vector<1x16x128xf32>
    %26 = vector.shape_cast %25 : vector<1x16x128xf32> to vector<16x128xf32>
    %27 = arith.mulf %26, %24 : vector<16x128xf32>
    %28 = arith.addf %22, %27 : vector<16x128xf32>
    %c1_i32_10 = arith.constant 1 : i32
    %29 = tpu.dynamic_rotate %21 by %c1_i32_10 dim 1 : vector<16x128xf32>, i32 -> vector<16x128xf32>
    %c2_i32_11 = arith.constant 2 : i32
    %30 = tpu.dynamic_rotate %29 by %c2_i32_11 dim 0 : vector<16x128xf32>, i32 -> vector<16x128xf32>
    %c1 = arith.constant 1 : index
    %c0_12 = arith.constant 0 : index
    %c0_13 = arith.constant 0 : index
    %31 = vector.load %arg1[%c1, %c0_12, %c0_13] : memref<25x16x128xf32, #tpu.memory_space<vmem>>, vector<1x16x128xf32>
    %32 = vector.shape_cast %31 : vector<1x16x128xf32> to vector<16x128xf32>
    %33 = arith.mulf %32, %30 : vector<16x128xf32>
    %34 = arith.addf %28, %33 : vector<16x128xf32>
    %c2_i32_14 = arith.constant 2 : i32
    %35 = tpu.dynamic_rotate %21 by %c2_i32_14 dim 0 : vector<16x128xf32>, i32 -> vector<16x128xf32>
    %c2 = arith.constant 2 : index
    %c0_15 = arith.constant 0 : index
    %c0_16 = arith.constant 0 : index
    %36 = vector.load %arg1[%c2, %c0_15, %c0_16] : memref<25x16x128xf32, #tpu.memory_space<vmem>>, vector<1x16x128xf32>
    %37 = vector.shape_cast %36 : vector<1x16x128xf32> to vector<16x128xf32>
    %38 = arith.mulf %37, %35 : vector<16x128xf32>
    %39 = arith.addf %34, %38 : vector<16x128xf32>
    %c127_i32 = arith.constant 127 : i32
    %40 = tpu.dynamic_rotate %21 by %c127_i32 dim 1 : vector<16x128xf32>, i32 -> vector<16x128xf32>
    %c2_i32_17 = arith.constant 2 : i32
    %41 = tpu.dynamic_rotate %40 by %c2_i32_17 dim 0 : vector<16x128xf32>, i32 -> vector<16x128xf32>
    %c3 = arith.constant 3 : index
    %c0_18 = arith.constant 0 : index
    %c0_19 = arith.constant 0 : index
    %42 = vector.load %arg1[%c3, %c0_18, %c0_19] : memref<25x16x128xf32, #tpu.memory_space<vmem>>, vector<1x16x128xf32>
    %43 = vector.shape_cast %42 : vector<1x16x128xf32> to vector<16x128xf32>
    %44 = arith.mulf %43, %41 : vector<16x128xf32>
    %45 = arith.addf %39, %44 : vector<16x128xf32>
    %c126_i32 = arith.constant 126 : i32
    %46 = tpu.dynamic_rotate %21 by %c126_i32 dim 1 : vector<16x128xf32>, i32 -> vector<16x128xf32>
    %c2_i32_20 = arith.constant 2 : i32
    %47 = tpu.dynamic_rotate %46 by %c2_i32_20 dim 0 : vector<16x128xf32>, i32 -> vector<16x128xf32>
    %c4 = arith.constant 4 : index
    %c0_21 = arith.constant 0 : index
    %c0_22 = arith.constant 0 : index
    %48 = vector.load %arg1[%c4, %c0_21, %c0_22] : memref<25x16x128xf32, #tpu.memory_space<vmem>>, vector<1x16x128xf32>
    %49 = vector.shape_cast %48 : vector<1x16x128xf32> to vector<16x128xf32>
    %50 = arith.mulf %49, %47 : vector<16x128xf32>
    %51 = arith.addf %45, %50 : vector<16x128xf32>
    %c2_i32_23 = arith.constant 2 : i32
    %52 = tpu.dynamic_rotate %21 by %c2_i32_23 dim 1 : vector<16x128xf32>, i32 -> vector<16x128xf32>
    %c1_i32_24 = arith.constant 1 : i32
    %53 = tpu.dynamic_rotate %52 by %c1_i32_24 dim 0 : vector<16x128xf32>, i32 -> vector<16x128xf32>
    %c5 = arith.constant 5 : index
    %c0_25 = arith.constant 0 : index
    %c0_26 = arith.constant 0 : index
    %54 = vector.load %arg1[%c5, %c0_25, %c0_26] : memref<25x16x128xf32, #tpu.memory_space<vmem>>, vector<1x16x128xf32>
    %55 = vector.shape_cast %54 : vector<1x16x128xf32> to vector<16x128xf32>
    %56 = arith.mulf %55, %53 : vector<16x128xf32>
    %57 = arith.addf %51, %56 : vector<16x128xf32>
    %c1_i32_27 = arith.constant 1 : i32
    %58 = tpu.dynamic_rotate %21 by %c1_i32_27 dim 1 : vector<16x128xf32>, i32 -> vector<16x128xf32>
    %c1_i32_28 = arith.constant 1 : i32
    %59 = tpu.dynamic_rotate %58 by %c1_i32_28 dim 0 : vector<16x128xf32>, i32 -> vector<16x128xf32>
    %c6 = arith.constant 6 : index
    %c0_29 = arith.constant 0 : index
    %c0_30 = arith.constant 0 : index
    %60 = vector.load %arg1[%c6, %c0_29, %c0_30] : memref<25x16x128xf32, #tpu.memory_space<vmem>>, vector<1x16x128xf32>
    %61 = vector.shape_cast %60 : vector<1x16x128xf32> to vector<16x128xf32>
    %62 = arith.mulf %61, %59 : vector<16x128xf32>
    %63 = arith.addf %57, %62 : vector<16x128xf32>
    %c1_i32_31 = arith.constant 1 : i32
    %64 = tpu.dynamic_rotate %21 by %c1_i32_31 dim 0 : vector<16x128xf32>, i32 -> vector<16x128xf32>
    %c7 = arith.constant 7 : index
    %c0_32 = arith.constant 0 : index
    %c0_33 = arith.constant 0 : index
    %65 = vector.load %arg1[%c7, %c0_32, %c0_33] : memref<25x16x128xf32, #tpu.memory_space<vmem>>, vector<1x16x128xf32>
    %66 = vector.shape_cast %65 : vector<1x16x128xf32> to vector<16x128xf32>
    %67 = arith.mulf %66, %64 : vector<16x128xf32>
    %68 = arith.addf %63, %67 : vector<16x128xf32>
    %c127_i32_34 = arith.constant 127 : i32
    %69 = tpu.dynamic_rotate %21 by %c127_i32_34 dim 1 : vector<16x128xf32>, i32 -> vector<16x128xf32>
    %c1_i32_35 = arith.constant 1 : i32
    %70 = tpu.dynamic_rotate %69 by %c1_i32_35 dim 0 : vector<16x128xf32>, i32 -> vector<16x128xf32>
    %c8 = arith.constant 8 : index
    %c0_36 = arith.constant 0 : index
    %c0_37 = arith.constant 0 : index
    %71 = vector.load %arg1[%c8, %c0_36, %c0_37] : memref<25x16x128xf32, #tpu.memory_space<vmem>>, vector<1x16x128xf32>
    %72 = vector.shape_cast %71 : vector<1x16x128xf32> to vector<16x128xf32>
    %73 = arith.mulf %72, %70 : vector<16x128xf32>
    %74 = arith.addf %68, %73 : vector<16x128xf32>
    %c126_i32_38 = arith.constant 126 : i32
    %75 = tpu.dynamic_rotate %21 by %c126_i32_38 dim 1 : vector<16x128xf32>, i32 -> vector<16x128xf32>
    %c1_i32_39 = arith.constant 1 : i32
    %76 = tpu.dynamic_rotate %75 by %c1_i32_39 dim 0 : vector<16x128xf32>, i32 -> vector<16x128xf32>
    %c9 = arith.constant 9 : index
    %c0_40 = arith.constant 0 : index
    %c0_41 = arith.constant 0 : index
    %77 = vector.load %arg1[%c9, %c0_40, %c0_41] : memref<25x16x128xf32, #tpu.memory_space<vmem>>, vector<1x16x128xf32>
    %78 = vector.shape_cast %77 : vector<1x16x128xf32> to vector<16x128xf32>
    %79 = arith.mulf %78, %76 : vector<16x128xf32>
    %80 = arith.addf %74, %79 : vector<16x128xf32>
    %c2_i32_42 = arith.constant 2 : i32
    %81 = tpu.dynamic_rotate %21 by %c2_i32_42 dim 1 : vector<16x128xf32>, i32 -> vector<16x128xf32>
    %c10 = arith.constant 10 : index
    %c0_43 = arith.constant 0 : index
    %c0_44 = arith.constant 0 : index
    %82 = vector.load %arg1[%c10, %c0_43, %c0_44] : memref<25x16x128xf32, #tpu.memory_space<vmem>>, vector<1x16x128xf32>
    %83 = vector.shape_cast %82 : vector<1x16x128xf32> to vector<16x128xf32>
    %84 = arith.mulf %83, %81 : vector<16x128xf32>
    %85 = arith.addf %80, %84 : vector<16x128xf32>
    %c1_i32_45 = arith.constant 1 : i32
    %86 = tpu.dynamic_rotate %21 by %c1_i32_45 dim 1 : vector<16x128xf32>, i32 -> vector<16x128xf32>
    %c11 = arith.constant 11 : index
    %c0_46 = arith.constant 0 : index
    %c0_47 = arith.constant 0 : index
    %87 = vector.load %arg1[%c11, %c0_46, %c0_47] : memref<25x16x128xf32, #tpu.memory_space<vmem>>, vector<1x16x128xf32>
    %88 = vector.shape_cast %87 : vector<1x16x128xf32> to vector<16x128xf32>
    %89 = arith.mulf %88, %86 : vector<16x128xf32>
    %90 = arith.addf %85, %89 : vector<16x128xf32>
    %c12 = arith.constant 12 : index
    %c0_48 = arith.constant 0 : index
    %c0_49 = arith.constant 0 : index
    %91 = vector.load %arg1[%c12, %c0_48, %c0_49] : memref<25x16x128xf32, #tpu.memory_space<vmem>>, vector<1x16x128xf32>
    %92 = vector.shape_cast %91 : vector<1x16x128xf32> to vector<16x128xf32>
    %93 = arith.mulf %92, %21 : vector<16x128xf32>
    %94 = arith.addf %90, %93 : vector<16x128xf32>
    %c127_i32_50 = arith.constant 127 : i32
    %95 = tpu.dynamic_rotate %21 by %c127_i32_50 dim 1 : vector<16x128xf32>, i32 -> vector<16x128xf32>
    %c13 = arith.constant 13 : index
    %c0_51 = arith.constant 0 : index
    %c0_52 = arith.constant 0 : index
    %96 = vector.load %arg1[%c13, %c0_51, %c0_52] : memref<25x16x128xf32, #tpu.memory_space<vmem>>, vector<1x16x128xf32>
    %97 = vector.shape_cast %96 : vector<1x16x128xf32> to vector<16x128xf32>
    %98 = arith.mulf %97, %95 : vector<16x128xf32>
    %99 = arith.addf %94, %98 : vector<16x128xf32>
    %c126_i32_53 = arith.constant 126 : i32
    %100 = tpu.dynamic_rotate %21 by %c126_i32_53 dim 1 : vector<16x128xf32>, i32 -> vector<16x128xf32>
    %c14 = arith.constant 14 : index
    %c0_54 = arith.constant 0 : index
    %c0_55 = arith.constant 0 : index
    %101 = vector.load %arg1[%c14, %c0_54, %c0_55] : memref<25x16x128xf32, #tpu.memory_space<vmem>>, vector<1x16x128xf32>
    %102 = vector.shape_cast %101 : vector<1x16x128xf32> to vector<16x128xf32>
    %103 = arith.mulf %102, %100 : vector<16x128xf32>
    %104 = arith.addf %99, %103 : vector<16x128xf32>
    %c2_i32_56 = arith.constant 2 : i32
    %105 = tpu.dynamic_rotate %21 by %c2_i32_56 dim 1 : vector<16x128xf32>, i32 -> vector<16x128xf32>
    %c15_i32 = arith.constant 15 : i32
    %106 = tpu.dynamic_rotate %105 by %c15_i32 dim 0 : vector<16x128xf32>, i32 -> vector<16x128xf32>
    %c15 = arith.constant 15 : index
    %c0_57 = arith.constant 0 : index
    %c0_58 = arith.constant 0 : index
    %107 = vector.load %arg1[%c15, %c0_57, %c0_58] : memref<25x16x128xf32, #tpu.memory_space<vmem>>, vector<1x16x128xf32>
    %108 = vector.shape_cast %107 : vector<1x16x128xf32> to vector<16x128xf32>
    %109 = arith.mulf %108, %106 : vector<16x128xf32>
    %110 = arith.addf %104, %109 : vector<16x128xf32>
    %c1_i32_59 = arith.constant 1 : i32
    %111 = tpu.dynamic_rotate %21 by %c1_i32_59 dim 1 : vector<16x128xf32>, i32 -> vector<16x128xf32>
    %c15_i32_60 = arith.constant 15 : i32
    %112 = tpu.dynamic_rotate %111 by %c15_i32_60 dim 0 : vector<16x128xf32>, i32 -> vector<16x128xf32>
    %c16 = arith.constant 16 : index
    %c0_61 = arith.constant 0 : index
    %c0_62 = arith.constant 0 : index
    %113 = vector.load %arg1[%c16, %c0_61, %c0_62] : memref<25x16x128xf32, #tpu.memory_space<vmem>>, vector<1x16x128xf32>
    %114 = vector.shape_cast %113 : vector<1x16x128xf32> to vector<16x128xf32>
    %115 = arith.mulf %114, %112 : vector<16x128xf32>
    %116 = arith.addf %110, %115 : vector<16x128xf32>
    %c15_i32_63 = arith.constant 15 : i32
    %117 = tpu.dynamic_rotate %21 by %c15_i32_63 dim 0 : vector<16x128xf32>, i32 -> vector<16x128xf32>
    %c17 = arith.constant 17 : index
    %c0_64 = arith.constant 0 : index
    %c0_65 = arith.constant 0 : index
    %118 = vector.load %arg1[%c17, %c0_64, %c0_65] : memref<25x16x128xf32, #tpu.memory_space<vmem>>, vector<1x16x128xf32>
    %119 = vector.shape_cast %118 : vector<1x16x128xf32> to vector<16x128xf32>
    %120 = arith.mulf %119, %117 : vector<16x128xf32>
    %121 = arith.addf %116, %120 : vector<16x128xf32>
    %c127_i32_66 = arith.constant 127 : i32
    %122 = tpu.dynamic_rotate %21 by %c127_i32_66 dim 1 : vector<16x128xf32>, i32 -> vector<16x128xf32>
    %c15_i32_67 = arith.constant 15 : i32
    %123 = tpu.dynamic_rotate %122 by %c15_i32_67 dim 0 : vector<16x128xf32>, i32 -> vector<16x128xf32>
    %c18 = arith.constant 18 : index
    %c0_68 = arith.constant 0 : index
    %c0_69 = arith.constant 0 : index
    %124 = vector.load %arg1[%c18, %c0_68, %c0_69] : memref<25x16x128xf32, #tpu.memory_space<vmem>>, vector<1x16x128xf32>
    %125 = vector.shape_cast %124 : vector<1x16x128xf32> to vector<16x128xf32>
    %126 = arith.mulf %125, %123 : vector<16x128xf32>
    %127 = arith.addf %121, %126 : vector<16x128xf32>
    %c126_i32_70 = arith.constant 126 : i32
    %128 = tpu.dynamic_rotate %21 by %c126_i32_70 dim 1 : vector<16x128xf32>, i32 -> vector<16x128xf32>
    %c15_i32_71 = arith.constant 15 : i32
    %129 = tpu.dynamic_rotate %128 by %c15_i32_71 dim 0 : vector<16x128xf32>, i32 -> vector<16x128xf32>
    %c19 = arith.constant 19 : index
    %c0_72 = arith.constant 0 : index
    %c0_73 = arith.constant 0 : index
    %130 = vector.load %arg1[%c19, %c0_72, %c0_73] : memref<25x16x128xf32, #tpu.memory_space<vmem>>, vector<1x16x128xf32>
    %131 = vector.shape_cast %130 : vector<1x16x128xf32> to vector<16x128xf32>
    %132 = arith.mulf %131, %129 : vector<16x128xf32>
    %133 = arith.addf %127, %132 : vector<16x128xf32>
    %c2_i32_74 = arith.constant 2 : i32
    %134 = tpu.dynamic_rotate %21 by %c2_i32_74 dim 1 : vector<16x128xf32>, i32 -> vector<16x128xf32>
    %c14_i32 = arith.constant 14 : i32
    %135 = tpu.dynamic_rotate %134 by %c14_i32 dim 0 : vector<16x128xf32>, i32 -> vector<16x128xf32>
    %c20 = arith.constant 20 : index
    %c0_75 = arith.constant 0 : index
    %c0_76 = arith.constant 0 : index
    %136 = vector.load %arg1[%c20, %c0_75, %c0_76] : memref<25x16x128xf32, #tpu.memory_space<vmem>>, vector<1x16x128xf32>
    %137 = vector.shape_cast %136 : vector<1x16x128xf32> to vector<16x128xf32>
    %138 = arith.mulf %137, %135 : vector<16x128xf32>
    %139 = arith.addf %133, %138 : vector<16x128xf32>
    %c1_i32_77 = arith.constant 1 : i32
    %140 = tpu.dynamic_rotate %21 by %c1_i32_77 dim 1 : vector<16x128xf32>, i32 -> vector<16x128xf32>
    %c14_i32_78 = arith.constant 14 : i32
    %141 = tpu.dynamic_rotate %140 by %c14_i32_78 dim 0 : vector<16x128xf32>, i32 -> vector<16x128xf32>
    %c21 = arith.constant 21 : index
    %c0_79 = arith.constant 0 : index
    %c0_80 = arith.constant 0 : index
    %142 = vector.load %arg1[%c21, %c0_79, %c0_80] : memref<25x16x128xf32, #tpu.memory_space<vmem>>, vector<1x16x128xf32>
    %143 = vector.shape_cast %142 : vector<1x16x128xf32> to vector<16x128xf32>
    %144 = arith.mulf %143, %141 : vector<16x128xf32>
    %145 = arith.addf %139, %144 : vector<16x128xf32>
    %c14_i32_81 = arith.constant 14 : i32
    %146 = tpu.dynamic_rotate %21 by %c14_i32_81 dim 0 : vector<16x128xf32>, i32 -> vector<16x128xf32>
    %c22 = arith.constant 22 : index
    %c0_82 = arith.constant 0 : index
    %c0_83 = arith.constant 0 : index
    %147 = vector.load %arg1[%c22, %c0_82, %c0_83] : memref<25x16x128xf32, #tpu.memory_space<vmem>>, vector<1x16x128xf32>
    %148 = vector.shape_cast %147 : vector<1x16x128xf32> to vector<16x128xf32>
    %149 = arith.mulf %148, %146 : vector<16x128xf32>
    %150 = arith.addf %145, %149 : vector<16x128xf32>
    %c127_i32_84 = arith.constant 127 : i32
    %151 = tpu.dynamic_rotate %21 by %c127_i32_84 dim 1 : vector<16x128xf32>, i32 -> vector<16x128xf32>
    %c14_i32_85 = arith.constant 14 : i32
    %152 = tpu.dynamic_rotate %151 by %c14_i32_85 dim 0 : vector<16x128xf32>, i32 -> vector<16x128xf32>
    %c23 = arith.constant 23 : index
    %c0_86 = arith.constant 0 : index
    %c0_87 = arith.constant 0 : index
    %153 = vector.load %arg1[%c23, %c0_86, %c0_87] : memref<25x16x128xf32, #tpu.memory_space<vmem>>, vector<1x16x128xf32>
    %154 = vector.shape_cast %153 : vector<1x16x128xf32> to vector<16x128xf32>
    %155 = arith.mulf %154, %152 : vector<16x128xf32>
    %156 = arith.addf %150, %155 : vector<16x128xf32>
    %c126_i32_88 = arith.constant 126 : i32
    %157 = tpu.dynamic_rotate %21 by %c126_i32_88 dim 1 : vector<16x128xf32>, i32 -> vector<16x128xf32>
    %c14_i32_89 = arith.constant 14 : i32
    %158 = tpu.dynamic_rotate %157 by %c14_i32_89 dim 0 : vector<16x128xf32>, i32 -> vector<16x128xf32>
    %c24 = arith.constant 24 : index
    %c0_90 = arith.constant 0 : index
    %c0_91 = arith.constant 0 : index
    %159 = vector.load %arg1[%c24, %c0_90, %c0_91] : memref<25x16x128xf32, #tpu.memory_space<vmem>>, vector<1x16x128xf32>
    %160 = vector.shape_cast %159 : vector<1x16x128xf32> to vector<16x128xf32>
    %161 = arith.mulf %160, %158 : vector<16x128xf32>
    %162 = arith.addf %156, %161 : vector<16x128xf32>
    %c0_92 = arith.constant 0 : index
    %c0_93 = arith.constant 0 : index
    %163 = vector.load %arg2[%c0_92, %c0_93] : memref<1x128xf32, #tpu.memory_space<vmem>>, vector<1x128xf32>
    %164 = vector.broadcast %163 : vector<1x128xf32> to vector<16x128xf32>
    %165 = arith.addf %162, %164 : vector<16x128xf32>
    %cst_94 = arith.constant 0.000000e+00 : f32
    %cst_95 = arith.constant 2.000000e+01 : f32
    %166 = vector.broadcast %cst_94 : f32 to vector<16x128xf32>
    %167 = arith.maximumf %166, %165 : vector<16x128xf32>
    %168 = vector.broadcast %cst_95 : f32 to vector<16x128xf32>
    %169 = arith.minimumf %168, %167 : vector<16x128xf32>
    %170 = vector.broadcast %20 : vector<1x128xf32> to vector<16x128xf32>
    %171 = arith.mulf %169, %170 : vector<16x128xf32>
    %cst_96 = arith.constant 0.000000e+00 : f32
    %172 = vector.broadcast %cst_96 : f32 to vector<16x128xf32>
    %c1_i32_97 = arith.constant 1 : i32
    %173 = tpu.dynamic_rotate %171 by %c1_i32_97 dim 1 : vector<16x128xf32>, i32 -> vector<16x128xf32>
    %c1_i32_98 = arith.constant 1 : i32
    %174 = tpu.dynamic_rotate %173 by %c1_i32_98 dim 0 : vector<16x128xf32>, i32 -> vector<16x128xf32>
    %c0_99 = arith.constant 0 : index
    %c0_100 = arith.constant 0 : index
    %c0_101 = arith.constant 0 : index
    %175 = vector.load %arg3[%c0_99, %c0_100, %c0_101] : memref<36x16x128xf32, #tpu.memory_space<vmem>>, vector<1x16x128xf32>
    %176 = vector.shape_cast %175 : vector<1x16x128xf32> to vector<16x128xf32>
    %177 = arith.mulf %176, %174 : vector<16x128xf32>
    %178 = arith.addf %172, %177 : vector<16x128xf32>
    %c1_i32_102 = arith.constant 1 : i32
    %179 = tpu.dynamic_rotate %171 by %c1_i32_102 dim 0 : vector<16x128xf32>, i32 -> vector<16x128xf32>
    %c1_103 = arith.constant 1 : index
    %c0_104 = arith.constant 0 : index
    %c0_105 = arith.constant 0 : index
    %180 = vector.load %arg3[%c1_103, %c0_104, %c0_105] : memref<36x16x128xf32, #tpu.memory_space<vmem>>, vector<1x16x128xf32>
    %181 = vector.shape_cast %180 : vector<1x16x128xf32> to vector<16x128xf32>
    %182 = arith.mulf %181, %179 : vector<16x128xf32>
    %183 = arith.addf %178, %182 : vector<16x128xf32>
    %c127_i32_106 = arith.constant 127 : i32
    %184 = tpu.dynamic_rotate %171 by %c127_i32_106 dim 1 : vector<16x128xf32>, i32 -> vector<16x128xf32>
    %c1_i32_107 = arith.constant 1 : i32
    %185 = tpu.dynamic_rotate %184 by %c1_i32_107 dim 0 : vector<16x128xf32>, i32 -> vector<16x128xf32>
    %c2_108 = arith.constant 2 : index
    %c0_109 = arith.constant 0 : index
    %c0_110 = arith.constant 0 : index
    %186 = vector.load %arg3[%c2_108, %c0_109, %c0_110] : memref<36x16x128xf32, #tpu.memory_space<vmem>>, vector<1x16x128xf32>
    %187 = vector.shape_cast %186 : vector<1x16x128xf32> to vector<16x128xf32>
    %188 = arith.mulf %187, %185 : vector<16x128xf32>
    %189 = arith.addf %183, %188 : vector<16x128xf32>
    %c1_i32_111 = arith.constant 1 : i32
    %190 = tpu.dynamic_rotate %171 by %c1_i32_111 dim 1 : vector<16x128xf32>, i32 -> vector<16x128xf32>
    %c3_112 = arith.constant 3 : index
    %c0_113 = arith.constant 0 : index
    %c0_114 = arith.constant 0 : index
    %191 = vector.load %arg3[%c3_112, %c0_113, %c0_114] : memref<36x16x128xf32, #tpu.memory_space<vmem>>, vector<1x16x128xf32>
    %192 = vector.shape_cast %191 : vector<1x16x128xf32> to vector<16x128xf32>
    %193 = arith.mulf %192, %190 : vector<16x128xf32>
    %194 = arith.addf %189, %193 : vector<16x128xf32>
    %c4_115 = arith.constant 4 : index
    %c0_116 = arith.constant 0 : index
    %c0_117 = arith.constant 0 : index
    %195 = vector.load %arg3[%c4_115, %c0_116, %c0_117] : memref<36x16x128xf32, #tpu.memory_space<vmem>>, vector<1x16x128xf32>
    %196 = vector.shape_cast %195 : vector<1x16x128xf32> to vector<16x128xf32>
    %197 = arith.mulf %196, %171 : vector<16x128xf32>
    %198 = arith.addf %194, %197 : vector<16x128xf32>
    %c127_i32_118 = arith.constant 127 : i32
    %199 = tpu.dynamic_rotate %171 by %c127_i32_118 dim 1 : vector<16x128xf32>, i32 -> vector<16x128xf32>
    %c5_119 = arith.constant 5 : index
    %c0_120 = arith.constant 0 : index
    %c0_121 = arith.constant 0 : index
    %200 = vector.load %arg3[%c5_119, %c0_120, %c0_121] : memref<36x16x128xf32, #tpu.memory_space<vmem>>, vector<1x16x128xf32>
    %201 = vector.shape_cast %200 : vector<1x16x128xf32> to vector<16x128xf32>
    %202 = arith.mulf %201, %199 : vector<16x128xf32>
    %203 = arith.addf %198, %202 : vector<16x128xf32>
    %c1_i32_122 = arith.constant 1 : i32
    %204 = tpu.dynamic_rotate %171 by %c1_i32_122 dim 1 : vector<16x128xf32>, i32 -> vector<16x128xf32>
    %c15_i32_123 = arith.constant 15 : i32
    %205 = tpu.dynamic_rotate %204 by %c15_i32_123 dim 0 : vector<16x128xf32>, i32 -> vector<16x128xf32>
    %c6_124 = arith.constant 6 : index
    %c0_125 = arith.constant 0 : index
    %c0_126 = arith.constant 0 : index
    %206 = vector.load %arg3[%c6_124, %c0_125, %c0_126] : memref<36x16x128xf32, #tpu.memory_space<vmem>>, vector<1x16x128xf32>
    %207 = vector.shape_cast %206 : vector<1x16x128xf32> to vector<16x128xf32>
    %208 = arith.mulf %207, %205 : vector<16x128xf32>
    %209 = arith.addf %203, %208 : vector<16x128xf32>
    %c15_i32_127 = arith.constant 15 : i32
    %210 = tpu.dynamic_rotate %171 by %c15_i32_127 dim 0 : vector<16x128xf32>, i32 -> vector<16x128xf32>
    %c7_128 = arith.constant 7 : index
    %c0_129 = arith.constant 0 : index
    %c0_130 = arith.constant 0 : index
    %211 = vector.load %arg3[%c7_128, %c0_129, %c0_130] : memref<36x16x128xf32, #tpu.memory_space<vmem>>, vector<1x16x128xf32>
    %212 = vector.shape_cast %211 : vector<1x16x128xf32> to vector<16x128xf32>
    %213 = arith.mulf %212, %210 : vector<16x128xf32>
    %214 = arith.addf %209, %213 : vector<16x128xf32>
    %c127_i32_131 = arith.constant 127 : i32
    %215 = tpu.dynamic_rotate %171 by %c127_i32_131 dim 1 : vector<16x128xf32>, i32 -> vector<16x128xf32>
    %c15_i32_132 = arith.constant 15 : i32
    %216 = tpu.dynamic_rotate %215 by %c15_i32_132 dim 0 : vector<16x128xf32>, i32 -> vector<16x128xf32>
    %c8_133 = arith.constant 8 : index
    %c0_134 = arith.constant 0 : index
    %c0_135 = arith.constant 0 : index
    %217 = vector.load %arg3[%c8_133, %c0_134, %c0_135] : memref<36x16x128xf32, #tpu.memory_space<vmem>>, vector<1x16x128xf32>
    %218 = vector.shape_cast %217 : vector<1x16x128xf32> to vector<16x128xf32>
    %219 = arith.mulf %218, %216 : vector<16x128xf32>
    %220 = arith.addf %214, %219 : vector<16x128xf32>
    %c97_i32 = arith.constant 97 : i32
    %221 = tpu.dynamic_rotate %171 by %c97_i32 dim 1 : vector<16x128xf32>, i32 -> vector<16x128xf32>
    %c1_i32_136 = arith.constant 1 : i32
    %222 = tpu.dynamic_rotate %221 by %c1_i32_136 dim 0 : vector<16x128xf32>, i32 -> vector<16x128xf32>
    %c9_137 = arith.constant 9 : index
    %c0_138 = arith.constant 0 : index
    %c0_139 = arith.constant 0 : index
    %223 = vector.load %arg3[%c9_137, %c0_138, %c0_139] : memref<36x16x128xf32, #tpu.memory_space<vmem>>, vector<1x16x128xf32>
    %224 = vector.shape_cast %223 : vector<1x16x128xf32> to vector<16x128xf32>
    %225 = arith.mulf %224, %222 : vector<16x128xf32>
    %226 = arith.addf %220, %225 : vector<16x128xf32>
    %c96_i32 = arith.constant 96 : i32
    %227 = tpu.dynamic_rotate %171 by %c96_i32 dim 1 : vector<16x128xf32>, i32 -> vector<16x128xf32>
    %c1_i32_140 = arith.constant 1 : i32
    %228 = tpu.dynamic_rotate %227 by %c1_i32_140 dim 0 : vector<16x128xf32>, i32 -> vector<16x128xf32>
    %c10_141 = arith.constant 10 : index
    %c0_142 = arith.constant 0 : index
    %c0_143 = arith.constant 0 : index
    %229 = vector.load %arg3[%c10_141, %c0_142, %c0_143] : memref<36x16x128xf32, #tpu.memory_space<vmem>>, vector<1x16x128xf32>
    %230 = vector.shape_cast %229 : vector<1x16x128xf32> to vector<16x128xf32>
    %231 = arith.mulf %230, %228 : vector<16x128xf32>
    %232 = arith.addf %226, %231 : vector<16x128xf32>
    %c95_i32 = arith.constant 95 : i32
    %233 = tpu.dynamic_rotate %171 by %c95_i32 dim 1 : vector<16x128xf32>, i32 -> vector<16x128xf32>
    %c1_i32_144 = arith.constant 1 : i32
    %234 = tpu.dynamic_rotate %233 by %c1_i32_144 dim 0 : vector<16x128xf32>, i32 -> vector<16x128xf32>
    %c11_145 = arith.constant 11 : index
    %c0_146 = arith.constant 0 : index
    %c0_147 = arith.constant 0 : index
    %235 = vector.load %arg3[%c11_145, %c0_146, %c0_147] : memref<36x16x128xf32, #tpu.memory_space<vmem>>, vector<1x16x128xf32>
    %236 = vector.shape_cast %235 : vector<1x16x128xf32> to vector<16x128xf32>
    %237 = arith.mulf %236, %234 : vector<16x128xf32>
    %238 = arith.addf %232, %237 : vector<16x128xf32>
    %c97_i32_148 = arith.constant 97 : i32
    %239 = tpu.dynamic_rotate %171 by %c97_i32_148 dim 1 : vector<16x128xf32>, i32 -> vector<16x128xf32>
    %c12_149 = arith.constant 12 : index
    %c0_150 = arith.constant 0 : index
    %c0_151 = arith.constant 0 : index
    %240 = vector.load %arg3[%c12_149, %c0_150, %c0_151] : memref<36x16x128xf32, #tpu.memory_space<vmem>>, vector<1x16x128xf32>
    %241 = vector.shape_cast %240 : vector<1x16x128xf32> to vector<16x128xf32>
    %242 = arith.mulf %241, %239 : vector<16x128xf32>
    %243 = arith.addf %238, %242 : vector<16x128xf32>
    %c96_i32_152 = arith.constant 96 : i32
    %244 = tpu.dynamic_rotate %171 by %c96_i32_152 dim 1 : vector<16x128xf32>, i32 -> vector<16x128xf32>
    %c13_153 = arith.constant 13 : index
    %c0_154 = arith.constant 0 : index
    %c0_155 = arith.constant 0 : index
    %245 = vector.load %arg3[%c13_153, %c0_154, %c0_155] : memref<36x16x128xf32, #tpu.memory_space<vmem>>, vector<1x16x128xf32>
    %246 = vector.shape_cast %245 : vector<1x16x128xf32> to vector<16x128xf32>
    %247 = arith.mulf %246, %244 : vector<16x128xf32>
    %248 = arith.addf %243, %247 : vector<16x128xf32>
    %c95_i32_156 = arith.constant 95 : i32
    %249 = tpu.dynamic_rotate %171 by %c95_i32_156 dim 1 : vector<16x128xf32>, i32 -> vector<16x128xf32>
    %c14_157 = arith.constant 14 : index
    %c0_158 = arith.constant 0 : index
    %c0_159 = arith.constant 0 : index
    %250 = vector.load %arg3[%c14_157, %c0_158, %c0_159] : memref<36x16x128xf32, #tpu.memory_space<vmem>>, vector<1x16x128xf32>
    %251 = vector.shape_cast %250 : vector<1x16x128xf32> to vector<16x128xf32>
    %252 = arith.mulf %251, %249 : vector<16x128xf32>
    %253 = arith.addf %248, %252 : vector<16x128xf32>
    %c97_i32_160 = arith.constant 97 : i32
    %254 = tpu.dynamic_rotate %171 by %c97_i32_160 dim 1 : vector<16x128xf32>, i32 -> vector<16x128xf32>
    %c15_i32_161 = arith.constant 15 : i32
    %255 = tpu.dynamic_rotate %254 by %c15_i32_161 dim 0 : vector<16x128xf32>, i32 -> vector<16x128xf32>
    %c15_162 = arith.constant 15 : index
    %c0_163 = arith.constant 0 : index
    %c0_164 = arith.constant 0 : index
    %256 = vector.load %arg3[%c15_162, %c0_163, %c0_164] : memref<36x16x128xf32, #tpu.memory_space<vmem>>, vector<1x16x128xf32>
    %257 = vector.shape_cast %256 : vector<1x16x128xf32> to vector<16x128xf32>
    %258 = arith.mulf %257, %255 : vector<16x128xf32>
    %259 = arith.addf %253, %258 : vector<16x128xf32>
    %c96_i32_165 = arith.constant 96 : i32
    %260 = tpu.dynamic_rotate %171 by %c96_i32_165 dim 1 : vector<16x128xf32>, i32 -> vector<16x128xf32>
    %c15_i32_166 = arith.constant 15 : i32
    %261 = tpu.dynamic_rotate %260 by %c15_i32_166 dim 0 : vector<16x128xf32>, i32 -> vector<16x128xf32>
    %c16_167 = arith.constant 16 : index
    %c0_168 = arith.constant 0 : index
    %c0_169 = arith.constant 0 : index
    %262 = vector.load %arg3[%c16_167, %c0_168, %c0_169] : memref<36x16x128xf32, #tpu.memory_space<vmem>>, vector<1x16x128xf32>
    %263 = vector.shape_cast %262 : vector<1x16x128xf32> to vector<16x128xf32>
    %264 = arith.mulf %263, %261 : vector<16x128xf32>
    %265 = arith.addf %259, %264 : vector<16x128xf32>
    %c95_i32_170 = arith.constant 95 : i32
    %266 = tpu.dynamic_rotate %171 by %c95_i32_170 dim 1 : vector<16x128xf32>, i32 -> vector<16x128xf32>
    %c15_i32_171 = arith.constant 15 : i32
    %267 = tpu.dynamic_rotate %266 by %c15_i32_171 dim 0 : vector<16x128xf32>, i32 -> vector<16x128xf32>
    %c17_172 = arith.constant 17 : index
    %c0_173 = arith.constant 0 : index
    %c0_174 = arith.constant 0 : index
    %268 = vector.load %arg3[%c17_172, %c0_173, %c0_174] : memref<36x16x128xf32, #tpu.memory_space<vmem>>, vector<1x16x128xf32>
    %269 = vector.shape_cast %268 : vector<1x16x128xf32> to vector<16x128xf32>
    %270 = arith.mulf %269, %267 : vector<16x128xf32>
    %271 = arith.addf %265, %270 : vector<16x128xf32>
    %c65_i32 = arith.constant 65 : i32
    %272 = tpu.dynamic_rotate %171 by %c65_i32 dim 1 : vector<16x128xf32>, i32 -> vector<16x128xf32>
    %c1_i32_175 = arith.constant 1 : i32
    %273 = tpu.dynamic_rotate %272 by %c1_i32_175 dim 0 : vector<16x128xf32>, i32 -> vector<16x128xf32>
    %c18_176 = arith.constant 18 : index
    %c0_177 = arith.constant 0 : index
    %c0_178 = arith.constant 0 : index
    %274 = vector.load %arg3[%c18_176, %c0_177, %c0_178] : memref<36x16x128xf32, #tpu.memory_space<vmem>>, vector<1x16x128xf32>
    %275 = vector.shape_cast %274 : vector<1x16x128xf32> to vector<16x128xf32>
    %276 = arith.mulf %275, %273 : vector<16x128xf32>
    %277 = arith.addf %271, %276 : vector<16x128xf32>
    %c64_i32 = arith.constant 64 : i32
    %278 = tpu.dynamic_rotate %171 by %c64_i32 dim 1 : vector<16x128xf32>, i32 -> vector<16x128xf32>
    %c1_i32_179 = arith.constant 1 : i32
    %279 = tpu.dynamic_rotate %278 by %c1_i32_179 dim 0 : vector<16x128xf32>, i32 -> vector<16x128xf32>
    %c19_180 = arith.constant 19 : index
    %c0_181 = arith.constant 0 : index
    %c0_182 = arith.constant 0 : index
    %280 = vector.load %arg3[%c19_180, %c0_181, %c0_182] : memref<36x16x128xf32, #tpu.memory_space<vmem>>, vector<1x16x128xf32>
    %281 = vector.shape_cast %280 : vector<1x16x128xf32> to vector<16x128xf32>
    %282 = arith.mulf %281, %279 : vector<16x128xf32>
    %283 = arith.addf %277, %282 : vector<16x128xf32>
    %c63_i32 = arith.constant 63 : i32
    %284 = tpu.dynamic_rotate %171 by %c63_i32 dim 1 : vector<16x128xf32>, i32 -> vector<16x128xf32>
    %c1_i32_183 = arith.constant 1 : i32
    %285 = tpu.dynamic_rotate %284 by %c1_i32_183 dim 0 : vector<16x128xf32>, i32 -> vector<16x128xf32>
    %c20_184 = arith.constant 20 : index
    %c0_185 = arith.constant 0 : index
    %c0_186 = arith.constant 0 : index
    %286 = vector.load %arg3[%c20_184, %c0_185, %c0_186] : memref<36x16x128xf32, #tpu.memory_space<vmem>>, vector<1x16x128xf32>
    %287 = vector.shape_cast %286 : vector<1x16x128xf32> to vector<16x128xf32>
    %288 = arith.mulf %287, %285 : vector<16x128xf32>
    %289 = arith.addf %283, %288 : vector<16x128xf32>
    %c65_i32_187 = arith.constant 65 : i32
    %290 = tpu.dynamic_rotate %171 by %c65_i32_187 dim 1 : vector<16x128xf32>, i32 -> vector<16x128xf32>
    %c21_188 = arith.constant 21 : index
    %c0_189 = arith.constant 0 : index
    %c0_190 = arith.constant 0 : index
    %291 = vector.load %arg3[%c21_188, %c0_189, %c0_190] : memref<36x16x128xf32, #tpu.memory_space<vmem>>, vector<1x16x128xf32>
    %292 = vector.shape_cast %291 : vector<1x16x128xf32> to vector<16x128xf32>
    %293 = arith.mulf %292, %290 : vector<16x128xf32>
    %294 = arith.addf %289, %293 : vector<16x128xf32>
    %c64_i32_191 = arith.constant 64 : i32
    %295 = tpu.dynamic_rotate %171 by %c64_i32_191 dim 1 : vector<16x128xf32>, i32 -> vector<16x128xf32>
    %c22_192 = arith.constant 22 : index
    %c0_193 = arith.constant 0 : index
    %c0_194 = arith.constant 0 : index
    %296 = vector.load %arg3[%c22_192, %c0_193, %c0_194] : memref<36x16x128xf32, #tpu.memory_space<vmem>>, vector<1x16x128xf32>
    %297 = vector.shape_cast %296 : vector<1x16x128xf32> to vector<16x128xf32>
    %298 = arith.mulf %297, %295 : vector<16x128xf32>
    %299 = arith.addf %294, %298 : vector<16x128xf32>
    %c63_i32_195 = arith.constant 63 : i32
    %300 = tpu.dynamic_rotate %171 by %c63_i32_195 dim 1 : vector<16x128xf32>, i32 -> vector<16x128xf32>
    %c23_196 = arith.constant 23 : index
    %c0_197 = arith.constant 0 : index
    %c0_198 = arith.constant 0 : index
    %301 = vector.load %arg3[%c23_196, %c0_197, %c0_198] : memref<36x16x128xf32, #tpu.memory_space<vmem>>, vector<1x16x128xf32>
    %302 = vector.shape_cast %301 : vector<1x16x128xf32> to vector<16x128xf32>
    %303 = arith.mulf %302, %300 : vector<16x128xf32>
    %304 = arith.addf %299, %303 : vector<16x128xf32>
    %c65_i32_199 = arith.constant 65 : i32
    %305 = tpu.dynamic_rotate %171 by %c65_i32_199 dim 1 : vector<16x128xf32>, i32 -> vector<16x128xf32>
    %c15_i32_200 = arith.constant 15 : i32
    %306 = tpu.dynamic_rotate %305 by %c15_i32_200 dim 0 : vector<16x128xf32>, i32 -> vector<16x128xf32>
    %c24_201 = arith.constant 24 : index
    %c0_202 = arith.constant 0 : index
    %c0_203 = arith.constant 0 : index
    %307 = vector.load %arg3[%c24_201, %c0_202, %c0_203] : memref<36x16x128xf32, #tpu.memory_space<vmem>>, vector<1x16x128xf32>
    %308 = vector.shape_cast %307 : vector<1x16x128xf32> to vector<16x128xf32>
    %309 = arith.mulf %308, %306 : vector<16x128xf32>
    %310 = arith.addf %304, %309 : vector<16x128xf32>
    %c64_i32_204 = arith.constant 64 : i32
    %311 = tpu.dynamic_rotate %171 by %c64_i32_204 dim 1 : vector<16x128xf32>, i32 -> vector<16x128xf32>
    %c15_i32_205 = arith.constant 15 : i32
    %312 = tpu.dynamic_rotate %311 by %c15_i32_205 dim 0 : vector<16x128xf32>, i32 -> vector<16x128xf32>
    %c25 = arith.constant 25 : index
    %c0_206 = arith.constant 0 : index
    %c0_207 = arith.constant 0 : index
    %313 = vector.load %arg3[%c25, %c0_206, %c0_207] : memref<36x16x128xf32, #tpu.memory_space<vmem>>, vector<1x16x128xf32>
    %314 = vector.shape_cast %313 : vector<1x16x128xf32> to vector<16x128xf32>
    %315 = arith.mulf %314, %312 : vector<16x128xf32>
    %316 = arith.addf %310, %315 : vector<16x128xf32>
    %c63_i32_208 = arith.constant 63 : i32
    %317 = tpu.dynamic_rotate %171 by %c63_i32_208 dim 1 : vector<16x128xf32>, i32 -> vector<16x128xf32>
    %c15_i32_209 = arith.constant 15 : i32
    %318 = tpu.dynamic_rotate %317 by %c15_i32_209 dim 0 : vector<16x128xf32>, i32 -> vector<16x128xf32>
    %c26 = arith.constant 26 : index
    %c0_210 = arith.constant 0 : index
    %c0_211 = arith.constant 0 : index
    %319 = vector.load %arg3[%c26, %c0_210, %c0_211] : memref<36x16x128xf32, #tpu.memory_space<vmem>>, vector<1x16x128xf32>
    %320 = vector.shape_cast %319 : vector<1x16x128xf32> to vector<16x128xf32>
    %321 = arith.mulf %320, %318 : vector<16x128xf32>
    %322 = arith.addf %316, %321 : vector<16x128xf32>
    %c33_i32 = arith.constant 33 : i32
    %323 = tpu.dynamic_rotate %171 by %c33_i32 dim 1 : vector<16x128xf32>, i32 -> vector<16x128xf32>
    %c1_i32_212 = arith.constant 1 : i32
    %324 = tpu.dynamic_rotate %323 by %c1_i32_212 dim 0 : vector<16x128xf32>, i32 -> vector<16x128xf32>
    %c27 = arith.constant 27 : index
    %c0_213 = arith.constant 0 : index
    %c0_214 = arith.constant 0 : index
    %325 = vector.load %arg3[%c27, %c0_213, %c0_214] : memref<36x16x128xf32, #tpu.memory_space<vmem>>, vector<1x16x128xf32>
    %326 = vector.shape_cast %325 : vector<1x16x128xf32> to vector<16x128xf32>
    %327 = arith.mulf %326, %324 : vector<16x128xf32>
    %328 = arith.addf %322, %327 : vector<16x128xf32>
    %c32_i32 = arith.constant 32 : i32
    %329 = tpu.dynamic_rotate %171 by %c32_i32 dim 1 : vector<16x128xf32>, i32 -> vector<16x128xf32>
    %c1_i32_215 = arith.constant 1 : i32
    %330 = tpu.dynamic_rotate %329 by %c1_i32_215 dim 0 : vector<16x128xf32>, i32 -> vector<16x128xf32>
    %c28 = arith.constant 28 : index
    %c0_216 = arith.constant 0 : index
    %c0_217 = arith.constant 0 : index
    %331 = vector.load %arg3[%c28, %c0_216, %c0_217] : memref<36x16x128xf32, #tpu.memory_space<vmem>>, vector<1x16x128xf32>
    %332 = vector.shape_cast %331 : vector<1x16x128xf32> to vector<16x128xf32>
    %333 = arith.mulf %332, %330 : vector<16x128xf32>
    %334 = arith.addf %328, %333 : vector<16x128xf32>
    %c31_i32 = arith.constant 31 : i32
    %335 = tpu.dynamic_rotate %171 by %c31_i32 dim 1 : vector<16x128xf32>, i32 -> vector<16x128xf32>
    %c1_i32_218 = arith.constant 1 : i32
    %336 = tpu.dynamic_rotate %335 by %c1_i32_218 dim 0 : vector<16x128xf32>, i32 -> vector<16x128xf32>
    %c29 = arith.constant 29 : index
    %c0_219 = arith.constant 0 : index
    %c0_220 = arith.constant 0 : index
    %337 = vector.load %arg3[%c29, %c0_219, %c0_220] : memref<36x16x128xf32, #tpu.memory_space<vmem>>, vector<1x16x128xf32>
    %338 = vector.shape_cast %337 : vector<1x16x128xf32> to vector<16x128xf32>
    %339 = arith.mulf %338, %336 : vector<16x128xf32>
    %340 = arith.addf %334, %339 : vector<16x128xf32>
    %c33_i32_221 = arith.constant 33 : i32
    %341 = tpu.dynamic_rotate %171 by %c33_i32_221 dim 1 : vector<16x128xf32>, i32 -> vector<16x128xf32>
    %c30 = arith.constant 30 : index
    %c0_222 = arith.constant 0 : index
    %c0_223 = arith.constant 0 : index
    %342 = vector.load %arg3[%c30, %c0_222, %c0_223] : memref<36x16x128xf32, #tpu.memory_space<vmem>>, vector<1x16x128xf32>
    %343 = vector.shape_cast %342 : vector<1x16x128xf32> to vector<16x128xf32>
    %344 = arith.mulf %343, %341 : vector<16x128xf32>
    %345 = arith.addf %340, %344 : vector<16x128xf32>
    %c32_i32_224 = arith.constant 32 : i32
    %346 = tpu.dynamic_rotate %171 by %c32_i32_224 dim 1 : vector<16x128xf32>, i32 -> vector<16x128xf32>
    %c31 = arith.constant 31 : index
    %c0_225 = arith.constant 0 : index
    %c0_226 = arith.constant 0 : index
    %347 = vector.load %arg3[%c31, %c0_225, %c0_226] : memref<36x16x128xf32, #tpu.memory_space<vmem>>, vector<1x16x128xf32>
    %348 = vector.shape_cast %347 : vector<1x16x128xf32> to vector<16x128xf32>
    %349 = arith.mulf %348, %346 : vector<16x128xf32>
    %350 = arith.addf %345, %349 : vector<16x128xf32>
    %c31_i32_227 = arith.constant 31 : i32
    %351 = tpu.dynamic_rotate %171 by %c31_i32_227 dim 1 : vector<16x128xf32>, i32 -> vector<16x128xf32>
    %c32 = arith.constant 32 : index
    %c0_228 = arith.constant 0 : index
    %c0_229 = arith.constant 0 : index
    %352 = vector.load %arg3[%c32, %c0_228, %c0_229] : memref<36x16x128xf32, #tpu.memory_space<vmem>>, vector<1x16x128xf32>
    %353 = vector.shape_cast %352 : vector<1x16x128xf32> to vector<16x128xf32>
    %354 = arith.mulf %353, %351 : vector<16x128xf32>
    %355 = arith.addf %350, %354 : vector<16x128xf32>
    %c33_i32_230 = arith.constant 33 : i32
    %356 = tpu.dynamic_rotate %171 by %c33_i32_230 dim 1 : vector<16x128xf32>, i32 -> vector<16x128xf32>
    %c15_i32_231 = arith.constant 15 : i32
    %357 = tpu.dynamic_rotate %356 by %c15_i32_231 dim 0 : vector<16x128xf32>, i32 -> vector<16x128xf32>
    %c33 = arith.constant 33 : index
    %c0_232 = arith.constant 0 : index
    %c0_233 = arith.constant 0 : index
    %358 = vector.load %arg3[%c33, %c0_232, %c0_233] : memref<36x16x128xf32, #tpu.memory_space<vmem>>, vector<1x16x128xf32>
    %359 = vector.shape_cast %358 : vector<1x16x128xf32> to vector<16x128xf32>
    %360 = arith.mulf %359, %357 : vector<16x128xf32>
    %361 = arith.addf %355, %360 : vector<16x128xf32>
    %c32_i32_234 = arith.constant 32 : i32
    %362 = tpu.dynamic_rotate %171 by %c32_i32_234 dim 1 : vector<16x128xf32>, i32 -> vector<16x128xf32>
    %c15_i32_235 = arith.constant 15 : i32
    %363 = tpu.dynamic_rotate %362 by %c15_i32_235 dim 0 : vector<16x128xf32>, i32 -> vector<16x128xf32>
    %c34 = arith.constant 34 : index
    %c0_236 = arith.constant 0 : index
    %c0_237 = arith.constant 0 : index
    %364 = vector.load %arg3[%c34, %c0_236, %c0_237] : memref<36x16x128xf32, #tpu.memory_space<vmem>>, vector<1x16x128xf32>
    %365 = vector.shape_cast %364 : vector<1x16x128xf32> to vector<16x128xf32>
    %366 = arith.mulf %365, %363 : vector<16x128xf32>
    %367 = arith.addf %361, %366 : vector<16x128xf32>
    %c31_i32_238 = arith.constant 31 : i32
    %368 = tpu.dynamic_rotate %171 by %c31_i32_238 dim 1 : vector<16x128xf32>, i32 -> vector<16x128xf32>
    %c15_i32_239 = arith.constant 15 : i32
    %369 = tpu.dynamic_rotate %368 by %c15_i32_239 dim 0 : vector<16x128xf32>, i32 -> vector<16x128xf32>
    %c35 = arith.constant 35 : index
    %c0_240 = arith.constant 0 : index
    %c0_241 = arith.constant 0 : index
    %370 = vector.load %arg3[%c35, %c0_240, %c0_241] : memref<36x16x128xf32, #tpu.memory_space<vmem>>, vector<1x16x128xf32>
    %371 = vector.shape_cast %370 : vector<1x16x128xf32> to vector<16x128xf32>
    %372 = arith.mulf %371, %369 : vector<16x128xf32>
    %373 = arith.addf %367, %372 : vector<16x128xf32>
    %c0_242 = arith.constant 0 : index
    %c0_243 = arith.constant 0 : index
    %374 = vector.load %arg4[%c0_242, %c0_243] : memref<1x128xf32, #tpu.memory_space<vmem>>, vector<1x128xf32>
    %375 = vector.broadcast %374 : vector<1x128xf32> to vector<16x128xf32>
    %376 = arith.addf %373, %375 : vector<16x128xf32>
    %cst_244 = arith.constant 0.000000e+00 : f32
    %cst_245 = arith.constant 2.000000e+01 : f32
    %377 = vector.broadcast %cst_244 : f32 to vector<16x128xf32>
    %378 = arith.maximumf %377, %376 : vector<16x128xf32>
    %379 = vector.broadcast %cst_245 : f32 to vector<16x128xf32>
    %380 = arith.minimumf %379, %378 : vector<16x128xf32>
    %381 = vector.broadcast %20 : vector<1x128xf32> to vector<16x128xf32>
    %382 = arith.mulf %380, %381 : vector<16x128xf32>
    %c0_246 = arith.constant 0 : index
    %c0_247 = arith.constant 0 : index
    %383 = vector.load %arg6[%c0_246, %c0_247] : memref<16x128xf32, #tpu.memory_space<vmem>>, vector<16x128xf32>
    tpu.vector_store %arg6[%c0_246, %c0_247], %382 {strides = array<i32>} : memref<16x128xf32, #tpu.memory_space<vmem>>, vector<16x128xf32>,
    return
  }
}

</mosaic_0001>

<llo_original>
// kernel: tpu_custom_call.1
$region0: #{tpu_custom_call.1}
  #allocation0 [shape = 'u32[]', space=smem, size = 0x4, offset = 0x4, fixed_abs, tag = 'smem constant byte address 0x4 - core index']
  #allocation1 [shape = 'u32[144,128]{1,0:T(1,128)}', space=vmem, size = 0x12000, scoped, tag = 'internal scratch']
  %s0 = inlined_call_operand.hbm [shape: f32[16,128], index: 0, kind: input, shape index: {}]
  %s1 = inlined_call_operand.hbm [shape: f32[25,16,128], index: 1, kind: input, shape index: {}]
  %s2 = inlined_call_operand.vmem [shape: f32[1,128], index: 2, kind: input, shape index: {}]
  %s3 = inlined_call_operand.hbm [shape: f32[36,16,128], index: 3, kind: input, shape index: {}]
  %s4 = inlined_call_operand.vmem [shape: f32[1,128], index: 4, kind: input, shape index: {}]
  %s5 = inlined_call_operand.vmem [shape: s32[1,128], index: 5, kind: input, shape index: {}]
  %s6 = inlined_call_operand.hbm [shape: f32[16,128], index: 6, kind: output, shape index: {}]
  %s7 = sld [smem:[#allocation0]]
  $region46: #{tpu_custom_call.1} parent=0
    _
  %s9 = ssub.s32 1, %s7
  %s10 = scalar_select 0, %s9, %s7
  $region1: #{tpu_custom_call.1} parent=0
    #allocation2 [shape = 'u8[8192]{0}', space=vmem, size = 0x2000, scoped, tag = 'input window, operand 0, single buffered']
    #allocation3 [shape = 's32[1]{0}', space=sflag, size = 0x4, scoped, tag = 'scoped memory for tpu_custom_call.1']
    #allocation4 [shape = 's32[1]{0}', space=sflag, size = 0x4, scoped, tag = 'scoped memory for tpu_custom_call.1']
    #allocation5 [shape = 'u8[204800]{0}', space=vmem, size = 0x32000, scoped, tag = 'input window, operand 1, single buffered']
    #allocation6 [shape = 's32[1]{0}', space=sflag, size = 0x4, scoped, tag = 'scoped memory for tpu_custom_call.1']
    #allocation7 [shape = 'u8[294912]{0}', space=vmem, size = 0x48000, scoped, tag = 'input window, operand 3, single buffered']
    #allocation8 [shape = 'u8[8192]{0}', space=vmem, size = 0x2000, scoped, tag = 'output window, operand 0, single buffered']
    %11 = vsyncpa [#allocation3], 0
    %12 = vsyncpa [#allocation6], 0
    %13 = vsyncpa [#allocation4], 0
    // Predicated region
    $region2: #{tpu_custom_call.1} parent=1 // pred_check
      _
    $region3: #{tpu_custom_call.1} parent=1 // pred_check_branch
      %15 = sbr.rel (0) target = $region5
    $region4: #{tpu_custom_call.1} parent=1 // pred_region
      %s17 = ssub.s32 256, 256
      %18 = vsyncadd [#allocation3], %s17
      %s19 = sshll.u32 [#allocation2], 4
      %s20 = int_to_ptr.vmem [resolvable:$true] %s19
      %25 = dma.hbm_to_vmem [thread:$0]  %s0, 256, %s20, [#allocation3], 128, 128, 8
    $region5: #{tpu_custom_call.1} parent=1 // pred_fallthru
      _
    // Predicated region
    $region6: #{tpu_custom_call.1} parent=1 // pred_check
      _
    $region7: #{tpu_custom_call.1} parent=1 // pred_check_branch
      %27 = sbr.rel (0) target = $region9
    $region8: #{tpu_custom_call.1} parent=1 // pred_region
      %s29 = ssub.s32 6400, 6400
      %30 = vsyncadd [#allocation6], %s29
      %s31 = sshll.u32 [#allocation5], 4
      %s32 = int_to_ptr.vmem [resolvable:$true] %s31
      %37 = dma.hbm_to_vmem [thread:$0]  %s1, 6400, %s32, [#allocation6], 128, 128, 8
    $region9: #{tpu_custom_call.1} parent=1 // pred_fallthru
      _
    // Predicated region
    $region10: #{tpu_custom_call.1} parent=1 // pred_check
      _
    $region11: #{tpu_custom_call.1} parent=1 // pred_check_branch
      %39 = sbr.rel (0) target = $region13
    $region12: #{tpu_custom_call.1} parent=1 // pred_region
      _
    $region13: #{tpu_custom_call.1} parent=1 // pred_fallthru
      _
    // Predicated region
    $region14: #{tpu_custom_call.1} parent=1 // pred_check
      _
    $region15: #{tpu_custom_call.1} parent=1 // pred_check_branch
      %41 = sbr.rel (0) target = $region17
    $region16: #{tpu_custom_call.1} parent=1 // pred_region
      %s43 = ssub.s32 9216, 9216
      %44 = vsyncadd [#allocation6], %s43
      %s45 = sshll.u32 [#allocation7], 4
      %s46 = int_to_ptr.vmem [resolvable:$true] %s45
      %51 = dma.hbm_to_vmem [thread:$0]  %s3, 9216, %s46, [#allocation6], 128, 128, 8
    $region17: #{tpu_custom_call.1} parent=1 // pred_fallthru
      _
    // Predicated region
    $region18: #{tpu_custom_call.1} parent=1 // pred_check
      _
    $region19: #{tpu_custom_call.1} parent=1 // pred_check_branch
      %53 = sbr.rel (0) target = $region21
    $region20: #{tpu_custom_call.1} parent=1 // pred_region
      _
    $region21: #{tpu_custom_call.1} parent=1 // pred_fallthru
      _
    // Predicated region
    $region22: #{tpu_custom_call.1} parent=1 // pred_check
      _
    $region23: #{tpu_custom_call.1} parent=1 // pred_check_branch
      %55 = sbr.rel (0) target = $region25
    $region24: #{tpu_custom_call.1} parent=1 // pred_region
      _
    $region25: #{tpu_custom_call.1} parent=1 // pred_fallthru
      _
    // Predicated region
    $region26: #{tpu_custom_call.1} parent=1 // pred_check
      _
    $region27: #{tpu_custom_call.1} parent=1 // pred_check_branch
      %57 = sbr.rel (0) target = $region29
    $region28: #{tpu_custom_call.1} parent=1 // pred_region
      %58 = dma.done [#allocation3], 256
    $region29: #{tpu_custom_call.1} parent=1 // pred_fallthru
      _
    // Predicated region
    $region30: #{tpu_custom_call.1} parent=1 // pred_check
      _
    $region31: #{tpu_custom_call.1} parent=1 // pred_check_branch
      %60 = sbr.rel (0) target = $region33
    $region32: #{tpu_custom_call.1} parent=1 // pred_region
      %61 = dma.done [#allocation6], 6400
    $region33: #{tpu_custom_call.1} parent=1 // pred_fallthru
      _
    // Predicated region
    $region34: #{tpu_custom_call.1} parent=1 // pred_check
      _
    $region35: #{tpu_custom_call.1} parent=1 // pred_check_branch
      %63 = sbr.rel (0) target = $region37
    $region36: #{tpu_custom_call.1} parent=1 // pred_region
      %64 = dma.done [#allocation6], 9216
    $region37: #{tpu_custom_call.1} parent=1 // pred_fallthru
      _
    %v65 = vlaneseq
    %v66 = vand.u32 %v65, 127
    %vm67 = vcmp.lt.s32.totalorder %v66, 0
    %v68 = vsub.s32 0, %v66
    %v69 = vsel %vm67, %v68, %v66
    %v70 = vshrl.u32 %v69, 4
    %v71 = vand.u32 %v69, 15
    %v72 = vsub.s32 0, %v71
    %v73 = vsel %vm67, %v72, %v71
    %vm74 = vcmp.ne.s32.totalorder %v73, 0
    %vm75 = vcmp.lt.s32.totalorder %v73, 0
    %vm76 = vmand %vm75, %vm74
    %v77 = vadd.s32 %v73, 16
    %v78 = vsel %vm76, %v77, %v73
    %v79 = vld [vmem:[%s5] sm:$0x1]
    %vm80 = vcmp.lt.s32.totalorder %v78, %v79
    %v81 = vsel %vm80, 1, 0
    %v82 = vcvt.s32.f32 %v81
    %v83 = vld [vmem:[#allocation2] sm:$0xff]
    %v84 = vld [vmem:[#allocation2 + $0x8] sm:$0xff]
    %85 = vrot.lane.b32.xlu0 %v83, 2
    %v86 = vpop.permute.xlu0 %85
    %87 = vrot.lane.b32.xlu0 %v84, 2
    %v88 = vpop.permute.xlu0 %87
    %v89 = vrot.slane %v86, 6
    %v90 = vrot.slane %v88, 6
    %v91 = vlaneseq
    %v92 = vshrl.u32 %v91, 7
    %vm93 = vcmp.lt.s32.totalorder %v92, 2
    %v94 = vsel %vm93, %v89, %v90
    %v95 = vsel %vm93, %v90, %v89
    %v96 = vld [vmem:[#allocation5] sm:$0xff]
    %v97 = vld [vmem:[#allocation5 + $0x8] sm:$0xff]
    %v98 = vmul.f32 %v96, %v95
    %v99 = vmul.f32 %v97, %v94
    %v100 = vadd.f32 %v98, 0.0
    %v101 = vadd.f32 %v99, 0.0
    %102 = vrot.lane.b32.xlu0 %v83, 1
    %v103 = vpop.permute.xlu0 %102
    %104 = vrot.lane.b32.xlu0 %v84, 1
    %v105 = vpop.permute.xlu0 %104
    %v106 = vrot.slane %v103, 6
    %v107 = vrot.slane %v105, 6
    %v108 = vsel %vm93, %v106, %v107
    %v109 = vsel %vm93, %v107, %v106
    %s110 = scalar_lea.vmem [#allocation5], 16
    %v111 = vld [vmem:[%s110] sm:$0xff]
    %v112 = vld [vmem:[%s110 + $0x8] sm:$0xff]
    %v113 = vmul.f32 %v111, %v109
    %v114 = vmul.f32 %v112, %v108
    %v115 = vadd.f32 %v100, %v113
    %v116 = vadd.f32 %v101, %v114
    %v117 = vrot.slane %v83, 6
    %v118 = vrot.slane %v84, 6
    %v119 = vsel %vm93, %v117, %v118
    %v120 = vsel %vm93, %v118, %v117
    %s121 = scalar_lea.vmem [#allocation5], 32
    %v122 = vld [vmem:[%s121] sm:$0xff]
    %v123 = vld [vmem:[%s121 + $0x8] sm:$0xff]
    %v124 = vmul.f32 %v122, %v120
    %v125 = vmul.f32 %v123, %v119
    %v126 = vadd.f32 %v115, %v124
    %v127 = vadd.f32 %v116, %v125
    %128 = vrot.lane.b32.xlu0 %v83, 127
    %v129 = vpop.permute.xlu0 %128
    %130 = vrot.lane.b32.xlu0 %v84, 127
    %v131 = vpop.permute.xlu0 %130
    %v132 = vrot.slane %v129, 6
    %v133 = vrot.slane %v131, 6
    %v134 = vsel %vm93, %v132, %v133
    %v135 = vsel %vm93, %v133, %v132
    %s136 = scalar_lea.vmem [#allocation5], 48
    %v137 = vld [vmem:[%s136] sm:$0xff]
    %v138 = vld [vmem:[%s136 + $0x8] sm:$0xff]
    %v139 = vmul.f32 %v137, %v135
    %v140 = vmul.f32 %v138, %v134
    %v141 = vadd.f32 %v126, %v139
    %v142 = vadd.f32 %v127, %v140
    %143 = vrot.lane.b32.xlu0 %v83, 126
    %v144 = vpop.permute.xlu0 %143
    %145 = vrot.lane.b32.xlu0 %v84, 126
    %v146 = vpop.permute.xlu0 %145
    %v147 = vrot.slane %v144, 6
    %v148 = vrot.slane %v146, 6
    %v149 = vsel %vm93, %v147, %v148
    %v150 = vsel %vm93, %v148, %v147
    %s151 = scalar_lea.vmem [#allocation5], 64
    %v152 = vld [vmem:[%s151] sm:$0xff]
    %v153 = vld [vmem:[%s151 + $0x8] sm:$0xff]
    %v154 = vmul.f32 %v152, %v150
    %v155 = vmul.f32 %v153, %v149
    %v156 = vadd.f32 %v141, %v154
    %v157 = vadd.f32 %v142, %v155
    %v158 = vrot.slane %v86, 7
    %v159 = vrot.slane %v88, 7
    %vm160 = vcmp.lt.s32.totalorder %v92, 1
    %v161 = vsel %vm160, %v158, %v159
    %v162 = vsel %vm160, %v159, %v158
    %s163 = scalar_lea.vmem [#allocation5], 80
    %v164 = vld [vmem:[%s163] sm:$0xff]
    %v165 = vld [vmem:[%s163 + $0x8] sm:$0xff]
    %v166 = vmul.f32 %v164, %v162
    %v167 = vmul.f32 %v165, %v161
    %v168 = vadd.f32 %v156, %v166
    %v169 = vadd.f32 %v157, %v167
    %v170 = vrot.slane %v103, 7
    %v171 = vrot.slane %v105, 7
    %v172 = vsel %vm160, %v170, %v171
    %v173 = vsel %vm160, %v171, %v170
    %s174 = scalar_lea.vmem [#allocation5], 96
    %v175 = vld [vmem:[%s174] sm:$0xff]
    %v176 = vld [vmem:[%s174 + $0x8] sm:$0xff]
    %v177 = vmul.f32 %v175, %v173
    %v178 = vmul.f32 %v176, %v172
    %v179 = vadd.f32 %v168, %v177
    %v180 = vadd.f32 %v169, %v178
    %v181 = vrot.slane %v83, 7
    %v182 = vrot.slane %v84, 7
    %v183 = vsel %vm160, %v181, %v182
    %v184 = vsel %vm160, %v182, %v181
    %s185 = scalar_lea.vmem [#allocation5], 112
    %v186 = vld [vmem:[%s185] sm:$0xff]
    %v187 = vld [vmem:[%s185 + $0x8] sm:$0xff]
    %v188 = vmul.f32 %v186, %v184
    %v189 = vmul.f32 %v187, %v183
    %v190 = vadd.f32 %v179, %v188
    %v191 = vadd.f32 %v180, %v189
    %v192 = vrot.slane %v129, 7
    %v193 = vrot.slane %v131, 7
    %v194 = vsel %vm160, %v192, %v193
    %v195 = vsel %vm160, %v193, %v192
    %s196 = scalar_lea.vmem [#allocation5], 128
    %v197 = vld [vmem:[%s196] sm:$0xff]
    %v198 = vld [vmem:[%s196 + $0x8] sm:$0xff]
    %v199 = vmul.f32 %v197, %v195
    %v200 = vmul.f32 %v198, %v194
    %v201 = vadd.f32 %v190, %v199
    %v202 = vadd.f32 %v191, %v200
    %v203 = vrot.slane %v144, 7
    %v204 = vrot.slane %v146, 7
    %v205 = vsel %vm160, %v203, %v204
    %v206 = vsel %vm160, %v204, %v203
    %s207 = scalar_lea.vmem [#allocation5], 144
    %v208 = vld [vmem:[%s207] sm:$0xff]
    %v209 = vld [vmem:[%s207 + $0x8] sm:$0xff]
    %v210 = vmul.f32 %v208, %v206
    %v211 = vmul.f32 %v209, %v205
    %v212 = vadd.f32 %v201, %v210
    %v213 = vadd.f32 %v202, %v211
    %s214 = scalar_lea.vmem [#allocation5], 160
    %v215 = vld [vmem:[%s214] sm:$0xff]
    %v216 = vld [vmem:[%s214 + $0x8] sm:$0xff]
    %v217 = vmul.f32 %v215, %v86
    %v218 = vmul.f32 %v216, %v88
    %v219 = vadd.f32 %v212, %v217
    %v220 = vadd.f32 %v213, %v218
    %s221 = scalar_lea.vmem [#allocation5], 176
    %v222 = vld [vmem:[%s221] sm:$0xff]
    %v223 = vld [vmem:[%s221 + $0x8] sm:$0xff]
    %v224 = vmul.f32 %v222, %v103
    %v225 = vmul.f32 %v223, %v105
    %v226 = vadd.f32 %v219, %v224
    %v227 = vadd.f32 %v220, %v225
    %s228 = scalar_lea.vmem [#allocation5], 192
    %v229 = vld [vmem:[%s228] sm:$0xff]
    %v230 = vld [vmem:[%s228 + $0x8] sm:$0xff]
    %v231 = vmul.f32 %v229, %v83
    %v232 = vmul.f32 %v230, %v84
    %v233 = vadd.f32 %v226, %v231
    %v234 = vadd.f32 %v227, %v232
    %s235 = scalar_lea.vmem [#allocation5], 208
    %v236 = vld [vmem:[%s235] sm:$0xff]
    %v237 = vld [vmem:[%s235 + $0x8] sm:$0xff]
    %v238 = vmul.f32 %v236, %v129
    %v239 = vmul.f32 %v237, %v131
    %v240 = vadd.f32 %v233, %v238
    %v241 = vadd.f32 %v234, %v239
    %s242 = scalar_lea.vmem [#allocation5], 224
    %v243 = vld [vmem:[%s242] sm:$0xff]
    %v244 = vld [vmem:[%s242 + $0x8] sm:$0xff]
    %v245 = vmul.f32 %v243, %v144
    %v246 = vmul.f32 %v244, %v146
    %v247 = vadd.f32 %v240, %v245
    %v248 = vadd.f32 %v241, %v246
    %v249 = vrot.slane %v86, 1
    %v250 = vrot.slane %v88, 1
    %vm251 = vcmp.lt.s32.totalorder %v92, 7
    %v252 = vsel %vm251, %v249, %v250
    %v253 = vsel %vm251, %v250, %v249
    %s254 = scalar_lea.vmem [#allocation5], 240
    %v255 = vld [vmem:[%s254] sm:$0xff]
    %v256 = vld [vmem:[%s254 + $0x8] sm:$0xff]
    %v257 = vmul.f32 %v255, %v252
    %v258 = vmul.f32 %v256, %v253
    %v259 = vadd.f32 %v247, %v257
    %v260 = vadd.f32 %v248, %v258
    %v261 = vrot.slane %v103, 1
    %v262 = vrot.slane %v105, 1
    %v263 = vsel %vm251, %v261, %v262
    %v264 = vsel %vm251, %v262, %v261
    %s265 = scalar_lea.vmem [#allocation5], 256
    %v266 = vld [vmem:[%s265] sm:$0xff]
    %v267 = vld [vmem:[%s265 + $0x8] sm:$0xff]
    %v268 = vmul.f32 %v266, %v263
    %v269 = vmul.f32 %v267, %v264
    %v270 = vadd.f32 %v259, %v268
    %v271 = vadd.f32 %v260, %v269
    %v272 = vrot.slane %v83, 1
    %v273 = vrot.slane %v84, 1
    %v274 = vsel %vm251, %v272, %v273
    %v275 = vsel %vm251, %v273, %v272
    %s276 = scalar_lea.vmem [#allocation5], 272
    %v277 = vld [vmem:[%s276] sm:$0xff]
    %v278 = vld [vmem:[%s276 + $0x8] sm:$0xff]
    %v279 = vmul.f32 %v277, %v274
    %v280 = vmul.f32 %v278, %v275
    %v281 = vadd.f32 %v270, %v279
    %v282 = vadd.f32 %v271, %v280
    %v283 = vrot.slane %v129, 1
    %v284 = vrot.slane %v131, 1
    %v285 = vsel %vm251, %v283, %v284
    %v286 = vsel %vm251, %v284, %v283
    %s287 = scalar_lea.vmem [#allocation5], 288
    %v288 = vld [vmem:[%s287] sm:$0xff]
    %v289 = vld [vmem:[%s287 + $0x8] sm:$0xff]
    %v290 = vmul.f32 %v288, %v285
    %v291 = vmul.f32 %v289, %v286
    %v292 = vadd.f32 %v281, %v290
    %v293 = vadd.f32 %v282, %v291
    %v294 = vrot.slane %v144, 1
    %v295 = vrot.slane %v146, 1
    %v296 = vsel %vm251, %v294, %v295
    %v297 = vsel %vm251, %v295, %v294
    %s298 = scalar_lea.vmem [#allocation5], 304
    %v299 = vld [vmem:[%s298] sm:$0xff]
    %v300 = vld [vmem:[%s298 + $0x8] sm:$0xff]
    %v301 = vmul.f32 %v299, %v296
    %v302 = vmul.f32 %v300, %v297
    %v303 = vadd.f32 %v292, %v301
    %v304 = vadd.f32 %v293, %v302
    %v305 = vrot.slane %v86, 2
    %v306 = vrot.slane %v88, 2
    %vm307 = vcmp.lt.s32.totalorder %v92, 6
    %v308 = vsel %vm307, %v305, %v306
    %v309 = vsel %vm307, %v306, %v305
    %s310 = scalar_lea.vmem [#allocation5], 320
    %v311 = vld [vmem:[%s310] sm:$0xff]
    %v312 = vld [vmem:[%s310 + $0x8] sm:$0xff]
    %v313 = vmul.f32 %v311, %v308
    %v314 = vmul.f32 %v312, %v309
    %v315 = vadd.f32 %v303, %v313
    %v316 = vadd.f32 %v304, %v314
    %v317 = vrot.slane %v103, 2
    %v318 = vrot.slane %v105, 2
    %v319 = vsel %vm307, %v317, %v318
    %v320 = vsel %vm307, %v318, %v317
    %s321 = scalar_lea.vmem [#allocation5], 336
    %v322 = vld [vmem:[%s321] sm:$0xff]
    %v323 = vld [vmem:[%s321 + $0x8] sm:$0xff]
    %v324 = vmul.f32 %v322, %v319
    %v325 = vmul.f32 %v323, %v320
    %v326 = vadd.f32 %v315, %v324
    %v327 = vadd.f32 %v316, %v325
    %v328 = vrot.slane %v83, 2
    %v329 = vrot.slane %v84, 2
    %v330 = vsel %vm307, %v328, %v329
    %v331 = vsel %vm307, %v329, %v328
    %s332 = scalar_lea.vmem [#allocation5], 352
    %v333 = vld [vmem:[%s332] sm:$0xff]
    %v334 = vld [vmem:[%s332 + $0x8] sm:$0xff]
    %v335 = vmul.f32 %v333, %v330
    %v336 = vmul.f32 %v334, %v331
    %v337 = vadd.f32 %v326, %v335
    %v338 = vadd.f32 %v327, %v336
    %v339 = vrot.slane %v129, 2
    %v340 = vrot.slane %v131, 2
    %v341 = vsel %vm307, %v339, %v340
    %v342 = vsel %vm307, %v340, %v339
    %s343 = scalar_lea.vmem [#allocation5], 368
    %v344 = vld [vmem:[%s343] sm:$0xff]
    %v345 = vld [vmem:[%s343 + $0x8] sm:$0xff]
    %v346 = vmul.f32 %v344, %v341
    %v347 = vmul.f32 %v345, %v342
    %v348 = vadd.f32 %v337, %v346
    %v349 = vadd.f32 %v338, %v347
    %v350 = vrot.slane %v144, 2
    %v351 = vrot.slane %v146, 2
    %v352 = vsel %vm307, %v350, %v351
    %v353 = vsel %vm307, %v351, %v350
    %s354 = scalar_lea.vmem [#allocation5], 384
    %v355 = vld [vmem:[%s354] sm:$0xff]
    %v356 = vld [vmem:[%s354 + $0x8] sm:$0xff]
    %v357 = vmul.f32 %v355, %v352
    %v358 = vmul.f32 %v356, %v353
    %v359 = vadd.f32 %v348, %v357
    %v360 = vadd.f32 %v349, %v358
    %v361 = vld [vmem:[%s2] sm:$0x1]
    %v363 = vlaneseq
    %v364 = vshrl.u32 %v363, 7
    %v365 = vsub.s32 0, %v364
    %v366 = vrot.slane %v361, %v365
    %v368 = vadd.f32 %v359, %v366
    %v369 = vadd.f32 %v360, %v366
    %v370 = vmax.f32 %v368, 0.0
    %v371 = vmax.f32 %v369, 0.0
    %v372 = vmin.f32 %v370, 20.0
    %v373 = vmin.f32 %v371, 20.0
    %v374 = vlaneseq
    %v375 = vshrl.u32 %v374, 7
    %v376 = vsub.s32 0, %v375
    %v377 = vrot.slane %v82, %v376
    %v378 = vmul.f32 %v372, %v377
    %v379 = vmul.f32 %v373, %v377
    %380 = vrot.lane.b32.xlu0 %v378, 1
    %v381 = vpop.permute.xlu0 %380
    %382 = vrot.lane.b32.xlu0 %v379, 1
    %v383 = vpop.permute.xlu0 %382
    %v384 = vrot.slane %v381, 7
    %v385 = vrot.slane %v383, 7
    %v386 = vsel %vm160, %v384, %v385
    %v387 = vsel %vm160, %v385, %v384
    %v388 = vld [vmem:[#allocation7] sm:$0xff]
    %v389 = vld [vmem:[#allocation7 + $0x8] sm:$0xff]
    %v390 = vmul.f32 %v388, %v387
    %v391 = vmul.f32 %v389, %v386
    %v392 = vadd.f32 %v390, 0.0
    %v393 = vadd.f32 %v391, 0.0
    %v394 = vrot.slane %v378, 7
    %v395 = vrot.slane %v379, 7
    %v396 = vsel %vm160, %v394, %v395
    %v397 = vsel %vm160, %v395, %v394
    %s398 = scalar_lea.vmem [#allocation7], 16
    %v399 = vld [vmem:[%s398] sm:$0xff]
    %v400 = vld [vmem:[%s398 + $0x8] sm:$0xff]
    %v401 = vmul.f32 %v399, %v397
    %v402 = vmul.f32 %v400, %v396
    %v403 = vadd.f32 %v392, %v401
    %v404 = vadd.f32 %v393, %v402
    %405 = vrot.lane.b32.xlu0 %v378, 127
    %v406 = vpop.permute.xlu0 %405
    %407 = vrot.lane.b32.xlu0 %v379, 127
    %v408 = vpop.permute.xlu0 %407
    %v409 = vrot.slane %v406, 7
    %v410 = vrot.slane %v408, 7
    %v411 = vsel %vm160, %v409, %v410
    %v412 = vsel %vm160, %v410, %v409
    %s413 = scalar_lea.vmem [#allocation7], 32
    %v414 = vld [vmem:[%s413] sm:$0xff]
    %v415 = vld [vmem:[%s413 + $0x8] sm:$0xff]
    %v416 = vmul.f32 %v414, %v412
    %v417 = vmul.f32 %v415, %v411
    %v418 = vadd.f32 %v403, %v416
    %v419 = vadd.f32 %v404, %v417
    %s420 = scalar_lea.vmem [#allocation7], 48
    %v421 = vld [vmem:[%s420] sm:$0xff]
    %v422 = vld [vmem:[%s420 + $0x8] sm:$0xff]
    %v423 = vmul.f32 %v421, %v381
    %v424 = vmul.f32 %v422, %v383
    %v425 = vadd.f32 %v418, %v423
    %v426 = vadd.f32 %v419, %v424
    %s427 = scalar_lea.vmem [#allocation7], 64
    %v428 = vld [vmem:[%s427] sm:$0xff]
    %v429 = vld [vmem:[%s427 + $0x8] sm:$0xff]
    %v430 = vmul.f32 %v428, %v378
    %v431 = vmul.f32 %v429, %v379
    %v432 = vadd.f32 %v425, %v430
    %v433 = vadd.f32 %v426, %v431
    %s434 = scalar_lea.vmem [#allocation7], 80
    %v435 = vld [vmem:[%s434] sm:$0xff]
    %v436 = vld [vmem:[%s434 + $0x8] sm:$0xff]
    %v437 = vmul.f32 %v435, %v406
    %v438 = vmul.f32 %v436, %v408
    %v439 = vadd.f32 %v432, %v437
    %v440 = vadd.f32 %v433, %v438
    %v441 = vrot.slane %v381, 1
    %v442 = vrot.slane %v383, 1
    %v443 = vsel %vm251, %v441, %v442
    %v444 = vsel %vm251, %v442, %v441
    %s445 = scalar_lea.vmem [#allocation7], 96
    %v446 = vld [vmem:[%s445] sm:$0xff]
    %v447 = vld [vmem:[%s445 + $0x8] sm:$0xff]
    %v448 = vmul.f32 %v446, %v443
    %v449 = vmul.f32 %v447, %v444
    %v450 = vadd.f32 %v439, %v448
    %v451 = vadd.f32 %v440, %v449
    %v452 = vrot.slane %v378, 1
    %v453 = vrot.slane %v379, 1
    %v454 = vsel %vm251, %v452, %v453
    %v455 = vsel %vm251, %v453, %v452
    %s456 = scalar_lea.vmem [#allocation7], 112
    %v457 = vld [vmem:[%s456] sm:$0xff]
    %v458 = vld [vmem:[%s456 + $0x8] sm:$0xff]
    %v459 = vmul.f32 %v457, %v454
    %v460 = vmul.f32 %v458, %v455
    %v461 = vadd.f32 %v450, %v459
    %v462 = vadd.f32 %v451, %v460
    %v463 = vrot.slane %v406, 1
    %v464 = vrot.slane %v408, 1
    %v465 = vsel %vm251, %v463, %v464
    %v466 = vsel %vm251, %v464, %v463
    %s467 = scalar_lea.vmem [#allocation7], 128
    %v468 = vld [vmem:[%s467] sm:$0xff]
    %v469 = vld [vmem:[%s467 + $0x8] sm:$0xff]
    %v470 = vmul.f32 %v468, %v465
    %v471 = vmul.f32 %v469, %v466
    %v472 = vadd.f32 %v461, %v470
    %v473 = vadd.f32 %v462, %v471
    %474 = vrot.lane.b32.xlu0 %v378, 97
    %v475 = vpop.permute.xlu0 %474
    %476 = vrot.lane.b32.xlu0 %v379, 97
    %v477 = vpop.permute.xlu0 %476
    %v478 = vrot.slane %v475, 7
    %v479 = vrot.slane %v477, 7
    %v480 = vsel %vm160, %v478, %v479
    %v481 = vsel %vm160, %v479, %v478
    %s482 = scalar_lea.vmem [#allocation7], 144
    %v483 = vld [vmem:[%s482] sm:$0xff]
    %v484 = vld [vmem:[%s482 + $0x8] sm:$0xff]
    %v485 = vmul.f32 %v483, %v481
    %v486 = vmul.f32 %v484, %v480
    %v487 = vadd.f32 %v472, %v485
    %v488 = vadd.f32 %v473, %v486
    %489 = vrot.lane.b32.xlu0 %v378, 96
    %v490 = vpop.permute.xlu0 %489
    %491 = vrot.lane.b32.xlu0 %v379, 96
    %v492 = vpop.permute.xlu0 %491
    %v493 = vrot.slane %v490, 7
    %v494 = vrot.slane %v492, 7
    %v495 = vsel %vm160, %v493, %v494
    %v496 = vsel %vm160, %v494, %v493
    %s497 = scalar_lea.vmem [#allocation7], 160
    %v498 = vld [vmem:[%s497] sm:$0xff]
    %v499 = vld [vmem:[%s497 + $0x8] sm:$0xff]
    %v500 = vmul.f32 %v498, %v496
    %v501 = vmul.f32 %v499, %v495
    %v502 = vadd.f32 %v487, %v500
    %v503 = vadd.f32 %v488, %v501
    %504 = vrot.lane.b32.xlu0 %v378, 95
    %v505 = vpop.permute.xlu0 %504
    %506 = vrot.lane.b32.xlu0 %v379, 95
    %v507 = vpop.permute.xlu0 %506
    %v508 = vrot.slane %v505, 7
    %v509 = vrot.slane %v507, 7
    %v510 = vsel %vm160, %v508, %v509
    %v511 = vsel %vm160, %v509, %v508
    %s512 = scalar_lea.vmem [#allocation7], 176
    %v513 = vld [vmem:[%s512] sm:$0xff]
    %v514 = vld [vmem:[%s512 + $0x8] sm:$0xff]
    %v515 = vmul.f32 %v513, %v511
    %v516 = vmul.f32 %v514, %v510
    %v517 = vadd.f32 %v502, %v515
    %v518 = vadd.f32 %v503, %v516
    %s519 = scalar_lea.vmem [#allocation7], 192
    %v520 = vld [vmem:[%s519] sm:$0xff]
    %v521 = vld [vmem:[%s519 + $0x8] sm:$0xff]
    %v522 = vmul.f32 %v520, %v475
    %v523 = vmul.f32 %v521, %v477
    %v524 = vadd.f32 %v517, %v522
    %v525 = vadd.f32 %v518, %v523
    %s526 = scalar_lea.vmem [#allocation7], 208
    %v527 = vld [vmem:[%s526] sm:$0xff]
    %v528 = vld [vmem:[%s526 + $0x8] sm:$0xff]
    %v529 = vmul.f32 %v527, %v490
    %v530 = vmul.f32 %v528, %v492
    %v531 = vadd.f32 %v524, %v529
    %v532 = vadd.f32 %v525, %v530
    %s533 = scalar_lea.vmem [#allocation7], 224
    %v534 = vld [vmem:[%s533] sm:$0xff]
    %v535 = vld [vmem:[%s533 + $0x8] sm:$0xff]
    %v536 = vmul.f32 %v534, %v505
    %v537 = vmul.f32 %v535, %v507
    %v538 = vadd.f32 %v531, %v536
    %v539 = vadd.f32 %v532, %v537
    %v540 = vrot.slane %v475, 1
    %v541 = vrot.slane %v477, 1
    %v542 = vsel %vm251, %v540, %v541
    %v543 = vsel %vm251, %v541, %v540
    %s544 = scalar_lea.vmem [#allocation7], 240
    %v545 = vld [vmem:[%s544] sm:$0xff]
    %v546 = vld [vmem:[%s544 + $0x8] sm:$0xff]
    %v547 = vmul.f32 %v545, %v542
    %v548 = vmul.f32 %v546, %v543
    %v549 = vadd.f32 %v538, %v547
    %v550 = vadd.f32 %v539, %v548
    %v551 = vrot.slane %v490, 1
    %v552 = vrot.slane %v492, 1
    %v553 = vsel %vm251, %v551, %v552
    %v554 = vsel %vm251, %v552, %v551
    %s555 = scalar_lea.vmem [#allocation7], 256
    %v556 = vld [vmem:[%s555] sm:$0xff]
    %v557 = vld [vmem:[%s555 + $0x8] sm:$0xff]
    %v558 = vmul.f32 %v556, %v553
    %v559 = vmul.f32 %v557, %v554
    %v560 = vadd.f32 %v549, %v558
    %v561 = vadd.f32 %v550, %v559
    %v562 = vrot.slane %v505, 1
    %v563 = vrot.slane %v507, 1
    %v564 = vsel %vm251, %v562, %v563
    %v565 = vsel %vm251, %v563, %v562
    %s566 = scalar_lea.vmem [#allocation7], 272
    %v567 = vld [vmem:[%s566] sm:$0xff]
    %v568 = vld [vmem:[%s566 + $0x8] sm:$0xff]
    %v569 = vmul.f32 %v567, %v564
    %v570 = vmul.f32 %v568, %v565
    %v571 = vadd.f32 %v560, %v569
    %v572 = vadd.f32 %v561, %v570
    %573 = vrot.lane.b32.xlu0 %v378, 65
    %v574 = vpop.permute.xlu0 %573
    %575 = vrot.lane.b32.xlu0 %v379, 65
    %v576 = vpop.permute.xlu0 %575
    %v577 = vrot.slane %v574, 7
    %v578 = vrot.slane %v576, 7
    %v579 = vsel %vm160, %v577, %v578
    %v580 = vsel %vm160, %v578, %v577
    %s581 = scalar_lea.vmem [#allocation7], 288
    %v582 = vld [vmem:[%s581] sm:$0xff]
    %v583 = vld [vmem:[%s581 + $0x8] sm:$0xff]
    %v584 = vmul.f32 %v582, %v580
    %v585 = vmul.f32 %v583, %v579
    %v586 = vadd.f32 %v571, %v584
    %v587 = vadd.f32 %v572, %v585
    %588 = vrot.lane.b32.xlu0 %v378, 64
    %v589 = vpop.permute.xlu0 %588
    %590 = vrot.lane.b32.xlu0 %v379, 64
    %v591 = vpop.permute.xlu0 %590
    %v592 = vrot.slane %v589, 7
    %v593 = vrot.slane %v591, 7
    %v594 = vsel %vm160, %v592, %v593
    %v595 = vsel %vm160, %v593, %v592
    %s596 = scalar_lea.vmem [#allocation7], 304
    %v597 = vld [vmem:[%s596] sm:$0xff]
    %v598 = vld [vmem:[%s596 + $0x8] sm:$0xff]
    %v599 = vmul.f32 %v597, %v595
    %v600 = vmul.f32 %v598, %v594
    %v601 = vadd.f32 %v586, %v599
    %v602 = vadd.f32 %v587, %v600
    %603 = vrot.lane.b32.xlu0 %v378, 63
    %v604 = vpop.permute.xlu0 %603
    %605 = vrot.lane.b32.xlu0 %v379, 63
    %v606 = vpop.permute.xlu0 %605
    %v607 = vrot.slane %v604, 7
    %v608 = vrot.slane %v606, 7
    %v609 = vsel %vm160, %v607, %v608
    %v610 = vsel %vm160, %v608, %v607
    %s611 = scalar_lea.vmem [#allocation7], 320
    %v612 = vld [vmem:[%s611] sm:$0xff]
    %v613 = vld [vmem:[%s611 + $0x8] sm:$0xff]
    %v614 = vmul.f32 %v612, %v610
    %v615 = vmul.f32 %v613, %v609
    %v616 = vadd.f32 %v601, %v614
    %v617 = vadd.f32 %v602, %v615
    %s618 = scalar_lea.vmem [#allocation7], 336
    %v619 = vld [vmem:[%s618] sm:$0xff]
    %v620 = vld [vmem:[%s618 + $0x8] sm:$0xff]
    %v621 = vmul.f32 %v619, %v574
    %v622 = vmul.f32 %v620, %v576
    %v623 = vadd.f32 %v616, %v621
    %v624 = vadd.f32 %v617, %v622
    %s625 = scalar_lea.vmem [#allocation7], 352
    %v626 = vld [vmem:[%s625] sm:$0xff]
    %v627 = vld [vmem:[%s625 + $0x8] sm:$0xff]
    %v628 = vmul.f32 %v626, %v589
    %v629 = vmul.f32 %v627, %v591
    %v630 = vadd.f32 %v623, %v628
    %v631 = vadd.f32 %v624, %v629
    %s632 = scalar_lea.vmem [#allocation7], 368
    %v633 = vld [vmem:[%s632] sm:$0xff]
    %v634 = vld [vmem:[%s632 + $0x8] sm:$0xff]
    %v635 = vmul.f32 %v633, %v604
    %v636 = vmul.f32 %v634, %v606
    %v637 = vadd.f32 %v630, %v635
    %v638 = vadd.f32 %v631, %v636
    %v639 = vrot.slane %v574, 1
    %v640 = vrot.slane %v576, 1
    %v641 = vsel %vm251, %v639, %v640
    %v642 = vsel %vm251, %v640, %v639
    %s643 = scalar_lea.vmem [#allocation7], 384
    %v644 = vld [vmem:[%s643] sm:$0xff]
    %v645 = vld [vmem:[%s643 + $0x8] sm:$0xff]
    %v646 = vmul.f32 %v644, %v641
    %v647 = vmul.f32 %v645, %v642
    %v648 = vadd.f32 %v637, %v646
    %v649 = vadd.f32 %v638, %v647
    %v650 = vrot.slane %v589, 1
    %v651 = vrot.slane %v591, 1
    %v652 = vsel %vm251, %v650, %v651
    %v653 = vsel %vm251, %v651, %v650
    %s654 = scalar_lea.vmem [#allocation7], 400
    %v655 = vld [vmem:[%s654] sm:$0xff]
    %v656 = vld [vmem:[%s654 + $0x8] sm:$0xff]
    %v657 = vmul.f32 %v655, %v652
    %v658 = vmul.f32 %v656, %v653
    %v659 = vadd.f32 %v648, %v657
    %v660 = vadd.f32 %v649, %v658
    %v661 = vrot.slane %v604, 1
    %v662 = vrot.slane %v606, 1
    %v663 = vsel %vm251, %v661, %v662
    %v664 = vsel %vm251, %v662, %v661
    %s665 = scalar_lea.vmem [#allocation7], 416
    %v666 = vld [vmem:[%s665] sm:$0xff]
    %v667 = vld [vmem:[%s665 + $0x8] sm:$0xff]
    %v668 = vmul.f32 %v666, %v663
    %v669 = vmul.f32 %v667, %v664
    %v670 = vadd.f32 %v659, %v668
    %v671 = vadd.f32 %v660, %v669
    %672 = vrot.lane.b32.xlu0 %v378, 33
    %v673 = vpop.permute.xlu0 %672
    %674 = vrot.lane.b32.xlu0 %v379, 33
    %v675 = vpop.permute.xlu0 %674
    %v676 = vrot.slane %v673, 7
    %v677 = vrot.slane %v675, 7
    %v678 = vsel %vm160, %v676, %v677
    %v679 = vsel %vm160, %v677, %v676
    %s680 = scalar_lea.vmem [#allocation7], 432
    %v681 = vld [vmem:[%s680] sm:$0xff]
    %v682 = vld [vmem:[%s680 + $0x8] sm:$0xff]
    %v683 = vmul.f32 %v681, %v679
    %v684 = vmul.f32 %v682, %v678
    %v685 = vadd.f32 %v670, %v683
    %v686 = vadd.f32 %v671, %v684
    %687 = vrot.lane.b32.xlu0 %v378, 32
    %v688 = vpop.permute.xlu0 %687
    %689 = vrot.lane.b32.xlu0 %v379, 32
    %v690 = vpop.permute.xlu0 %689
    %v691 = vrot.slane %v688, 7
    %v692 = vrot.slane %v690, 7
    %v693 = vsel %vm160, %v691, %v692
    %v694 = vsel %vm160, %v692, %v691
    %s695 = scalar_lea.vmem [#allocation7], 448
    %v696 = vld [vmem:[%s695] sm:$0xff]
    %v697 = vld [vmem:[%s695 + $0x8] sm:$0xff]
    %v698 = vmul.f32 %v696, %v694
    %v699 = vmul.f32 %v697, %v693
    %v700 = vadd.f32 %v685, %v698
    %v701 = vadd.f32 %v686, %v699
    %702 = vrot.lane.b32.xlu0 %v378, 31
    %v703 = vpop.permute.xlu0 %702
    %704 = vrot.lane.b32.xlu0 %v379, 31
    %v705 = vpop.permute.xlu0 %704
    %v706 = vrot.slane %v703, 7
    %v707 = vrot.slane %v705, 7
    %v708 = vsel %vm160, %v706, %v707
    %v709 = vsel %vm160, %v707, %v706
    %s710 = scalar_lea.vmem [#allocation7], 464
    %v711 = vld [vmem:[%s710] sm:$0xff]
    %v712 = vld [vmem:[%s710 + $0x8] sm:$0xff]
    %v713 = vmul.f32 %v711, %v709
    %v714 = vmul.f32 %v712, %v708
    %v715 = vadd.f32 %v700, %v713
    %v716 = vadd.f32 %v701, %v714
    %s717 = scalar_lea.vmem [#allocation7], 480
    %v718 = vld [vmem:[%s717] sm:$0xff]
    %v719 = vld [vmem:[%s717 + $0x8] sm:$0xff]
    %v720 = vmul.f32 %v718, %v673
    %v721 = vmul.f32 %v719, %v675
    %v722 = vadd.f32 %v715, %v720
    %v723 = vadd.f32 %v716, %v721
    %s724 = scalar_lea.vmem [#allocation7], 496
    %v725 = vld [vmem:[%s724] sm:$0xff]
    %v726 = vld [vmem:[%s724 + $0x8] sm:$0xff]
    %v727 = vmul.f32 %v725, %v688
    %v728 = vmul.f32 %v726, %v690
    %v729 = vadd.f32 %v722, %v727
    %v730 = vadd.f32 %v723, %v728
    %s731 = scalar_lea.vmem [#allocation7], 512
    %v732 = vld [vmem:[%s731] sm:$0xff]
    %v733 = vld [vmem:[%s731 + $0x8] sm:$0xff]
    %v734 = vmul.f32 %v732, %v703
    %v735 = vmul.f32 %v733, %v705
    %v736 = vadd.f32 %v729, %v734
    %v737 = vadd.f32 %v730, %v735
    %v738 = vrot.slane %v673, 1
    %v739 = vrot.slane %v675, 1
    %v740 = vsel %vm251, %v738, %v739
    %v741 = vsel %vm251, %v739, %v738
    %s742 = scalar_lea.vmem [#allocation7], 528
    %v743 = vld [vmem:[%s742] sm:$0xff]
    %v744 = vld [vmem:[%s742 + $0x8] sm:$0xff]
    %v745 = vmul.f32 %v743, %v740
    %v746 = vmul.f32 %v744, %v741
    %v747 = vadd.f32 %v736, %v745
    %v748 = vadd.f32 %v737, %v746
    %v749 = vrot.slane %v688, 1
    %v750 = vrot.slane %v690, 1
    %v751 = vsel %vm251, %v749, %v750
    %v752 = vsel %vm251, %v750, %v749
    %s753 = scalar_lea.vmem [#allocation7], 544
    %v754 = vld [vmem:[%s753] sm:$0xff]
    %v755 = vld [vmem:[%s753 + $0x8] sm:$0xff]
    %v756 = vmul.f32 %v754, %v751
    %v757 = vmul.f32 %v755, %v752
    %v758 = vadd.f32 %v747, %v756
    %v759 = vadd.f32 %v748, %v757
    %v760 = vrot.slane %v703, 1
    %v761 = vrot.slane %v705, 1
    %v762 = vsel %vm251, %v760, %v761
    %v763 = vsel %vm251, %v761, %v760
    %s764 = scalar_lea.vmem [#allocation7], 560
    %v765 = vld [vmem:[%s764] sm:$0xff]
    %v766 = vld [vmem:[%s764 + $0x8] sm:$0xff]
    %v767 = vmul.f32 %v765, %v762
    %v768 = vmul.f32 %v766, %v763
    %v769 = vadd.f32 %v758, %v767
    %v770 = vadd.f32 %v759, %v768
    %v771 = vld [vmem:[%s4] sm:$0x1]
    %v773 = vlaneseq
    %v774 = vshrl.u32 %v773, 7
    %v775 = vsub.s32 0, %v774
    %v776 = vrot.slane %v771, %v775
    %v778 = vadd.f32 %v769, %v776
    %v779 = vadd.f32 %v770, %v776
    %v780 = vmax.f32 %v778, 0.0
    %v781 = vmax.f32 %v779, 0.0
    %v782 = vmin.f32 %v780, 20.0
    %v783 = vmin.f32 %v781, 20.0
    %v784 = vmul.f32 %v782, %v377
    %v785 = vmul.f32 %v783, %v377
    %786 = vst [vmem:[#allocation8] sm:$0xff] %v784
    %787 = vst [vmem:[#allocation8 + $0x8] sm:$0xff] %v785
    // Predicated region
    $region38: #{tpu_custom_call.1} parent=1 // pred_check
      _
    $region39: #{tpu_custom_call.1} parent=1 // pred_check_branch
      %789 = sbr.rel (0) target = $region41
    $region40: #{tpu_custom_call.1} parent=1 // pred_region
      %s791 = ssub.s32 256, 256
      %792 = vsyncadd [#allocation4], %s791
      %s793 = sshll.u32 [#allocation8], 4
      %s794 = int_to_ptr.vmem [resolvable:$true] %s793
      %799 = dma.vmem_to_hbm [thread:$0]  %s794, 256, %s6, [#allocation4], 128, 128, 8
    $region41: #{tpu_custom_call.1} parent=1 // pred_fallthru
      _
    // Predicated region
    $region42: #{tpu_custom_call.1} parent=1 // pred_check
      _
    $region43: #{tpu_custom_call.1} parent=1 // pred_check_branch
      %801 = sbr.rel (0) target = $region45
    $region44: #{tpu_custom_call.1} parent=1 // pred_region
      %802 = dma.done [#allocation4], 256
    $region45: #{tpu_custom_call.1} parent=1 // pred_fallthru
      _
    %803 = vsyncpa [#allocation3], 1
    %804 = vsyncpa [#allocation6], 1
    %805 = vsyncpa [#allocation4], 1

</llo_original>
